<compile_context>
chip_gen: v5e
topology: v5e:2x2
jax: 0.10.0
libtpu: 0.0.40
codegen_flags: <defaults>
</compile_context>

<pallas_src>
import functools

import jax
import jax.numpy as jnp
from jax.experimental import pallas as pl
from jax.experimental.pallas import tpu as pltpu

# ---- module constants (from train.py) ----
N_EMBED = 384
BLOCK_SIZE = 256          # max context; only an upper bound on T
NUM_HEADS = 6
HEAD_SIZE = N_EMBED // NUM_HEADS  # 64
NEG_INF = -1e30


def mha_kernel(x_ref, wqkv_ref, wp_ref, bp_ref, o_ref, cat_ref, *, exp_dtype):
    """`block_b` batch elements per grid step; all heads + projection fused."""
    Bt, T, C = x_ref.shape
    H, hs = NUM_HEADS, HEAD_SIZE
    N = Bt * T

    # ---- fused q/k/v projection: one lane-dense (N, C) x (C, 3C) matmul.
    # The C**-0.5 score scale is pre-folded into the q columns of wqkv; the
    # f32 MXU result is cast to bf16 once so the big (N, 3C) intermediate
    # lives at half width for the rest of the kernel.
    x = x_ref[...].reshape(N, C).astype(jnp.bfloat16)
    qkv = jnp.dot(x, wqkv_ref[...],
                  preferred_element_type=jnp.float32).astype(jnp.bfloat16)

    # ---- additive causal mask (finite), broadcast ONCE and reused per head
    # (JAX does not CSE broadcast_in_dim across the static head unroll).
    row = jax.lax.broadcasted_iota(jnp.int32, (T, T), 0)
    col = jax.lax.broadcasted_iota(jnp.int32, (T, T), 1)
    neg = jnp.where(row >= col, 0.0, NEG_INF).astype(jnp.float32)   # (T, T)
    neg_b = jnp.broadcast_to(neg[None], (Bt, T, T))                 # (Bt, T, T)

    wp = wp_ref[...]                                                # (C, C) bf16
    bp = bp_ref[...].astype(jnp.float32)                            # (1, C)

    # ---- per-head attention; heads handled in pairs so writes into the
    # (N, C) bf16 concat scratch are 128 lanes wide (no masked vst).
    for hp in range(H // 2):
        pair = []
        for h in (2 * hp, 2 * hp + 1):                              # static unroll
            lo = h * hs
            q_h = qkv[:, lo:lo + hs].reshape(Bt, T, hs)
            k_h = qkv[:, C + lo:C + lo + hs].reshape(Bt, T, hs)
            v_h = qkv[:, 2 * C + lo:2 * C + lo + hs].reshape(Bt, T, hs)

            # scores (scale already folded into q) + causal mask
            s = jnp.einsum("btd,bud->btu", q_h, k_h,
                           preferred_element_type=jnp.float32) + neg_b
            m = jnp.max(s, axis=-1, keepdims=True)
            # exp in bf16 on v6e/v7x (bf16 EUP), f32 elsewhere; max/sum/recip f32
            e = jnp.exp((s - m).astype(exp_dtype))
            l = jnp.sum(e.astype(jnp.float32), axis=-1, keepdims=True)
            inv = pl.reciprocal(l, approx=True)
            wei = (e * inv).astype(jnp.bfloat16)                    # (Bt, T, T)
            # dropout(wei): identity in eval mode

            out_h = jnp.einsum("btu,bud->btd", wei, v_h,
                               preferred_element_type=jnp.float32)  # (Bt, T, hs)
            pair.append(out_h.astype(jnp.bfloat16))

        cat_ref[:, 2 * hp * hs:(2 * hp + 2) * hs] = (
            jnp.concatenate(pair, axis=-1).reshape(N, 2 * hs))

    # ---- single K=384 output projection over the concatenated heads + bias
    y = jnp.dot(cat_ref[...], wp, preferred_element_type=jnp.float32) + bp
    # dropout(proj): identity in eval mode
    o_ref[...] = y.reshape(Bt, T, C).astype(o_ref.dtype)


def _device_kind():
    try:
        return jax.devices()[0].device_kind.lower()
    except Exception:
        return ""


def _step_vmem_bytes(bb, T, x_bytes):
    """Rough per-grid-step VMEM estimate (used to size block_b)."""
    C = N_EMBED
    N = bb * T
    w = (C * 3 * C + C * C) * 2 + C * 4          # bf16 weights + f32 bias
    xo = 2 * (N * C * x_bytes) * 2               # x + out blocks, double-buffered
    qkv = N * 3 * C * 2                          # bf16 qkv
    cat = N * C * 2                              # bf16 concat scratch
    scores = 3 * bb * T * T * 4                  # ~3 live f32 (bb, T, T) tensors
    y = N * C * 4                                # f32 projection result
    return 2 * w + xo + qkv + cat + scores + y + (2 << 20)   # + slack


def _pick_block_b(B, T, x_bytes, dual_tc, budget):
    cands = [bb for bb in (16, 8, 4, 2, 1)
             if B % bb == 0 and _step_vmem_bytes(bb, T, x_bytes) <= budget]
    if not cands:
        return 1
    if dual_tc:
        # v7x: two TensorCores share the single "parallel" grid axis, so prefer
        # an even number of grid steps (avoid a one-step tail on one core).
        even = [bb for bb in cands if (B // bb) % 2 == 0]
        if even:
            return even[0]
    # v5e/v6e: single TC — just take the largest tile that fits.
    return cands[0]


def multi_head_attention(x, wq, wk, wv, wp, bp, *, block_b=None):
    """Pallas MHA.  wq/wk/wv: (H, C, hs); wp: (C, C) (in, out); bp: (1, C).

    NOTE (v5e/v6e HBM traffic): for minimum DMA bytes pass `x` already in
    bfloat16 (cast upstream in the producing op); the output dtype follows the
    input dtype.
    """
    B, T, C = x.shape
    H, _, hs = wq.shape
    assert H * hs == C == N_EMBED and H % 2 == 0

    kind = _device_kind()
    is_v7 = "v7" in kind
    bf16_eup = ("v6" in kind) or is_v7            # v6e/v7x EUP supports bf16
    vmem_budget = (48 << 20) if is_v7 else (96 << 20)

    # Pack per-head projection weights into one lane-dense (C, 3C) bf16 matrix
    # (head-major columns); fold the softmax scale (C**-0.5, per train.py)
    # into the q columns so the kernel never multiplies the score tensor.
    def _pack(w):
        return jnp.transpose(w, (1, 0, 2)).reshape(C, C)

    wqkv = jnp.concatenate(
        [_pack(wq) * (C ** -0.5), _pack(wk), _pack(wv)],
        axis=1).astype(jnp.bfloat16)                                 # (C, 3C)
    wp_bf = wp.astype(jnp.bfloat16)
    bp_f32 = bp.reshape(1, C).astype(jnp.float32)

    if block_b is None:
        block_b = _pick_block_b(B, T, jnp.dtype(x.dtype).itemsize,
                                is_v7, vmem_budget)
    assert B % block_b == 0, "batch must be divisible by block_b"
    grid = (B // block_b,)

    kernel = functools.partial(
        mha_kernel, exp_dtype=jnp.bfloat16 if bf16_eup else jnp.float32)

    # NOTE: weight BlockSpecs have constant index_maps, so they are DMA'd only
    # once; their nominal double-buffer cost (~2.3 MiB) is accepted even under
    # v7x's 64 MiB VMEM.
    return pl.pallas_call(
        kernel,
        out_shape=jax.ShapeDtypeStruct((B, T, C), x.dtype),
        grid_spec=pltpu.PrefetchScalarGridSpec(
            num_scalar_prefetch=0,
            grid=grid,
            in_specs=[
                pl.BlockSpec((block_b, T, C), lambda b: (b, 0, 0)),  # x
                pl.BlockSpec((C, 3 * C), lambda b: (0, 0)),          # W_qkv
                pl.BlockSpec((C, C), lambda b: (0, 0)),              # W_proj
                pl.BlockSpec((1, C), lambda b: (0, 0)),              # b_proj
            ],
            out_specs=pl.BlockSpec((block_b, T, C), lambda b: (b, 0, 0)),
            scratch_shapes=[pltpu.VMEM((block_b * T, C), jnp.bfloat16)],
        ),
        compiler_params=pltpu.CompilerParams(
            dimension_semantics=("parallel",),
            vmem_limit_bytes=vmem_budget),
    )(x, wqkv, wp_bf, bp_f32)


def reference_mha(x, wq, wk, wv, wp, bp):
    """Pure-JAX f32 reference matching the PyTorch forward (eval mode)."""
    B, T, C = x.shape
    q = jnp.einsum("btc,hcs->bhts", x, wq)
    k = jnp.einsum("btc,hcs->bhts", x, wk)
    v = jnp.einsum("btc,hcs->bhts", x, wv)
    wei = jnp.einsum("bhts,bhus->bhtu", q, k) * (C ** -0.5)
    mask = jnp.tril(jnp.ones((T, T), dtype=bool))
    wei = jnp.where(mask[None, None], wei, -jnp.inf)
    wei = jax.nn.softmax(wei, axis=-1)
    out = jnp.einsum("bhtu,bhus->bhts", wei, v)
    cat = jnp.transpose(out, (0, 2, 1, 3)).reshape(B, T, C)
    return cat @ wp + bp[0]


if __name__ == "__main__":
    key = jax.random.PRNGKey(0)
    kx, kq, kk, kv, kp, kb = jax.random.split(key, 6)

    B, T = 2, 8                                   # small shapes; T <= block_size
    x = jax.random.normal(kx, (B, T, N_EMBED), dtype=jnp.float32)

    # deterministic init, PyTorch-Linear-like uniform(-1/sqrt(fan_in), +)
    bound = 1.0 / (N_EMBED ** 0.5)
    wq = jax.random.uniform(kq, (NUM_HEADS, N_EMBED, HEAD_SIZE),
                            minval=-bound, maxval=bound, dtype=jnp.float32)
    wk = jax.random.uniform(kk, (NUM_HEADS, N_EMBED, HEAD_SIZE),
                            minval=-bound, maxval=bound, dtype=jnp.float32)
    wv = jax.random.uniform(kv, (NUM_HEADS, N_EMBED, HEAD_SIZE),
                            minval=-bound, maxval=bound, dtype=jnp.float32)
    wp = jax.random.uniform(kp, (N_EMBED, N_EMBED),
                            minval=-bound, maxval=bound, dtype=jnp.float32)
    bp = jax.random.uniform(kb, (1, N_EMBED),
                            minval=-bound, maxval=bound, dtype=jnp.float32)

    out = multi_head_attention(x, wq, wk, wv, wp, bp)
    out = jax.block_until_ready(out)

    ref = reference_mha(x, wq, wk, wv, wp, bp)
    assert out.shape == (B, T, N_EMBED)
    # Kernel uses bf16 MXU operands (f32 accumulation), bf16 exp on v6e/v7x,
    # and approx reciprocal in the softmax, so compare against the f32
    # reference with a bf16-level tolerance.
    assert jnp.allclose(out, ref, atol=2e-2, rtol=2e-2), "mismatch vs reference"

    print("KERNEL_OK")
</pallas_src>

<mosaic_0001>
module attributes {stable_mosaic.version = 11 : i64} {
  func.func @mha_kernel(%arg0: i32, %arg1: memref<2x8x384xf32, #tpu.memory_space<vmem>>, %arg2: memref<384x1152xbf16, #tpu.memory_space<vmem>>, %arg3: memref<384x384xbf16, #tpu.memory_space<vmem>>, %arg4: memref<1x384xf32, #tpu.memory_space<vmem>>, %arg5: memref<2x8x384xf32, #tpu.memory_space<vmem>>, %arg6: memref<16x384xbf16, #tpu.memory_space<vmem>>) attributes {dimension_semantics = [#tpu.dimension_semantics<parallel>], iteration_bounds = array<i64: 1>, scalar_prefetch = 0 : i64, scratch_operands = 1 : i64, tpu.core_type = #tpu.core_type<tc>, window_params = [{transform_indices = @transform_0, window_bounds = array<i64: 2, 8, 384>}, {pipeline_mode = #tpu.pipeline_mode<synchronous>, transform_indices = @transform_1, window_bounds = array<i64: 384, 1152>}, {pipeline_mode = #tpu.pipeline_mode<synchronous>, transform_indices = @transform_2, window_bounds = array<i64: 384, 384>}, {pipeline_mode = #tpu.pipeline_mode<synchronous>, transform_indices = @transform_3, window_bounds = array<i64: 1, 384>}, {transform_indices = @transform_4, window_bounds = array<i64: 2, 8, 384>}]} {
    %c0 = arith.constant 0 : index
    %c0_0 = arith.constant 0 : index
    %c0_1 = arith.constant 0 : index
    %0 = vector.load %arg1[%c0, %c0_0, %c0_1] : memref<2x8x384xf32, #tpu.memory_space<vmem>>, vector<2x8x384xf32>
    %1 = vector.shape_cast %0 : vector<2x8x384xf32> to vector<16x384xf32>
    %2 = arith.truncf %1 : vector<16x384xf32> to vector<16x384xbf16>
    %c0_2 = arith.constant 0 : index
    %c0_3 = arith.constant 0 : index
    %3 = vector.load %arg2[%c0_2, %c0_3] : memref<384x1152xbf16, #tpu.memory_space<vmem>>, vector<384x1152xbf16>
    %cst = arith.constant dense<0.000000e+00> : vector<16x1152xf32>
    %4 = tpu.matmul %2, %3, %cst {dimension_numbers = #tpu.dot_dimension_numbers<[1], [0], [0], [1], [0, 0, 1, 1], [], []>} : vector<16x384xbf16>, vector<384x1152xbf16>, vector<16x1152xf32> -> vector<16x1152xf32>
    %5 = arith.truncf %4 : vector<16x1152xf32> to vector<16x1152xbf16>
    %6 = tpu.iota {dimensions = array<i32: 0>} : vector<8x8xi32>
    %7 = tpu.iota {dimensions = array<i32: 1>} : vector<8x8xi32>
    %8 = arith.cmpi sge, %6, %7 : vector<8x8xi32>
    %cst_4 = arith.constant 0.000000e+00 : f32
    %cst_5 = arith.constant -1.000000e+30 : f32
    %9 = vector.broadcast %cst_4 : f32 to vector<8x8xf32>
    %10 = vector.broadcast %cst_5 : f32 to vector<8x8xf32>
    %11 = arith.select %8, %9, %10 : vector<8x8xi1>, vector<8x8xf32>
    %12 = vector.shape_cast %11 : vector<8x8xf32> to vector<1x8x8xf32>
    %13 = vector.shape_cast %12 : vector<1x8x8xf32> to vector<1x8x8xf32>
    %14 = vector.broadcast %13 : vector<1x8x8xf32> to vector<2x8x8xf32>
    %c0_6 = arith.constant 0 : index
    %c0_7 = arith.constant 0 : index
    %15 = vector.load %arg3[%c0_6, %c0_7] : memref<384x384xbf16, #tpu.memory_space<vmem>>, vector<384x384xbf16>
    %c0_8 = arith.constant 0 : index
    %c0_9 = arith.constant 0 : index
    %16 = vector.load %arg4[%c0_8, %c0_9] : memref<1x384xf32, #tpu.memory_space<vmem>>, vector<1x384xf32>
    %17 = vector.extract_strided_slice %5 {offsets = [0, 0], sizes = [16, 64], strides = [1, 1]} : vector<16x1152xbf16> to vector<16x64xbf16>
    %18 = vector.shape_cast %17 : vector<16x64xbf16> to vector<2x8x64xbf16>
    %19 = vector.extract_strided_slice %5 {offsets = [0, 384], sizes = [16, 64], strides = [1, 1]} : vector<16x1152xbf16> to vector<16x64xbf16>
    %20 = vector.shape_cast %19 : vector<16x64xbf16> to vector<2x8x64xbf16>
    %21 = vector.extract_strided_slice %5 {offsets = [0, 768], sizes = [16, 64], strides = [1, 1]} : vector<16x1152xbf16> to vector<16x64xbf16>
    %22 = vector.shape_cast %21 : vector<16x64xbf16> to vector<2x8x64xbf16>
    "tpu.trace_start"() <{level = 10 : i32, message = "btd,bud->btu"}> : () -> ()
    %cst_10 = arith.constant dense<0.000000e+00> : vector<2x8x8xf32>
    %23 = tpu.matmul %18, %20, %cst_10 {dimension_numbers = #tpu.dot_dimension_numbers<[2], [2], [1], [1], [0, 0, 0, 1, 1, 1], [0], [0]>} : vector<2x8x64xbf16>, vector<2x8x64xbf16>, vector<2x8x8xf32> -> vector<2x8x8xf32>
    "tpu.trace_stop"() : () -> ()
    %24 = arith.addf %23, %14 : vector<2x8x8xf32>
    %cst_11 = arith.constant dense<0xFF800000> : vector<2x8xf32>
    %25 = vector.multi_reduction <maximumf>, %24, %cst_11 [2] : vector<2x8x8xf32> to vector<2x8xf32>
    %26 = vector.shape_cast %25 : vector<2x8xf32> to vector<2x8x1xf32>
    %27 = vector.broadcast %26 : vector<2x8x1xf32> to vector<2x8x8xf32>
    %28 = arith.subf %24, %27 : vector<2x8x8xf32>
    %29 = math.exp %28 : vector<2x8x8xf32>
    %cst_12 = arith.constant dense<0.000000e+00> : vector<2x8xf32>
    %30 = vector.multi_reduction <add>, %29, %cst_12 [2] : vector<2x8x8xf32> to vector<2x8xf32>
    %31 = vector.shape_cast %30 : vector<2x8xf32> to vector<2x8x1xf32>
    %32 = tpu.reciprocal %31 {approx = true} : vector<2x8x1xf32> -> vector<2x8x1xf32>
    %33 = vector.broadcast %32 : vector<2x8x1xf32> to vector<2x8x8xf32>
    %34 = arith.mulf %29, %33 : vector<2x8x8xf32>
    %35 = arith.truncf %34 : vector<2x8x8xf32> to vector<2x8x8xbf16>
    "tpu.trace_start"() <{level = 10 : i32, message = "btu,bud->btd"}> : () -> ()
    %cst_13 = arith.constant dense<0.000000e+00> : vector<2x8x64xf32>
    %36 = tpu.matmul %35, %22, %cst_13 {dimension_numbers = #tpu.dot_dimension_numbers<[2], [1], [1], [2], [0, 0, 0, 1, 1, 2], [0], [0]>} : vector<2x8x8xbf16>, vector<2x8x64xbf16>, vector<2x8x64xf32> -> vector<2x8x64xf32>
    "tpu.trace_stop"() : () -> ()
    %37 = arith.truncf %36 : vector<2x8x64xf32> to vector<2x8x64xbf16>
    %38 = vector.extract_strided_slice %5 {offsets = [0, 64], sizes = [16, 64], strides = [1, 1]} : vector<16x1152xbf16> to vector<16x64xbf16>
    %39 = vector.shape_cast %38 : vector<16x64xbf16> to vector<2x8x64xbf16>
    %40 = vector.extract_strided_slice %5 {offsets = [0, 448], sizes = [16, 64], strides = [1, 1]} : vector<16x1152xbf16> to vector<16x64xbf16>
    %41 = vector.shape_cast %40 : vector<16x64xbf16> to vector<2x8x64xbf16>
    %42 = vector.extract_strided_slice %5 {offsets = [0, 832], sizes = [16, 64], strides = [1, 1]} : vector<16x1152xbf16> to vector<16x64xbf16>
    %43 = vector.shape_cast %42 : vector<16x64xbf16> to vector<2x8x64xbf16>
    "tpu.trace_start"() <{level = 10 : i32, message = "btd,bud->btu"}> : () -> ()
    %cst_14 = arith.constant dense<0.000000e+00> : vector<2x8x8xf32>
    %44 = tpu.matmul %39, %41, %cst_14 {dimension_numbers = #tpu.dot_dimension_numbers<[2], [2], [1], [1], [0, 0, 0, 1, 1, 1], [0], [0]>} : vector<2x8x64xbf16>, vector<2x8x64xbf16>, vector<2x8x8xf32> -> vector<2x8x8xf32>
    "tpu.trace_stop"() : () -> ()
    %45 = arith.addf %44, %14 : vector<2x8x8xf32>
    %cst_15 = arith.constant dense<0xFF800000> : vector<2x8xf32>
    %46 = vector.multi_reduction <maximumf>, %45, %cst_15 [2] : vector<2x8x8xf32> to vector<2x8xf32>
    %47 = vector.shape_cast %46 : vector<2x8xf32> to vector<2x8x1xf32>
    %48 = vector.broadcast %47 : vector<2x8x1xf32> to vector<2x8x8xf32>
    %49 = arith.subf %45, %48 : vector<2x8x8xf32>
    %50 = math.exp %49 : vector<2x8x8xf32>
    %cst_16 = arith.constant dense<0.000000e+00> : vector<2x8xf32>
    %51 = vector.multi_reduction <add>, %50, %cst_16 [2] : vector<2x8x8xf32> to vector<2x8xf32>
    %52 = vector.shape_cast %51 : vector<2x8xf32> to vector<2x8x1xf32>
    %53 = tpu.reciprocal %52 {approx = true} : vector<2x8x1xf32> -> vector<2x8x1xf32>
    %54 = vector.broadcast %53 : vector<2x8x1xf32> to vector<2x8x8xf32>
    %55 = arith.mulf %50, %54 : vector<2x8x8xf32>
    %56 = arith.truncf %55 : vector<2x8x8xf32> to vector<2x8x8xbf16>
    "tpu.trace_start"() <{level = 10 : i32, message = "btu,bud->btd"}> : () -> ()
    %cst_17 = arith.constant dense<0.000000e+00> : vector<2x8x64xf32>
    %57 = tpu.matmul %56, %43, %cst_17 {dimension_numbers = #tpu.dot_dimension_numbers<[2], [1], [1], [2], [0, 0, 0, 1, 1, 2], [0], [0]>} : vector<2x8x8xbf16>, vector<2x8x64xbf16>, vector<2x8x64xf32> -> vector<2x8x64xf32>
    "tpu.trace_stop"() : () -> ()
    %58 = arith.truncf %57 : vector<2x8x64xf32> to vector<2x8x64xbf16>
    %59 = tpu.concatenate %37, %58 in 2 : vector<2x8x64xbf16>, vector<2x8x64xbf16> -> vector<2x8x128xbf16>
    %60 = vector.shape_cast %59 : vector<2x8x128xbf16> to vector<16x128xbf16>
    %c0_18 = arith.constant 0 : index
    %c0_19 = arith.constant 0 : index
    %61 = vector.load %arg6[%c0_18, %c0_19] : memref<16x384xbf16, #tpu.memory_space<vmem>>, vector<16x128xbf16>
    tpu.vector_store %arg6[%c0_18, %c0_19], %60 {strides = array<i32>} : memref<16x384xbf16, #tpu.memory_space<vmem>>, vector<16x128xbf16>,
    %62 = vector.extract_strided_slice %5 {offsets = [0, 128], sizes = [16, 64], strides = [1, 1]} : vector<16x1152xbf16> to vector<16x64xbf16>
    %63 = vector.shape_cast %62 : vector<16x64xbf16> to vector<2x8x64xbf16>
    %64 = vector.extract_strided_slice %5 {offsets = [0, 512], sizes = [16, 64], strides = [1, 1]} : vector<16x1152xbf16> to vector<16x64xbf16>
    %65 = vector.shape_cast %64 : vector<16x64xbf16> to vector<2x8x64xbf16>
    %66 = vector.extract_strided_slice %5 {offsets = [0, 896], sizes = [16, 64], strides = [1, 1]} : vector<16x1152xbf16> to vector<16x64xbf16>
    %67 = vector.shape_cast %66 : vector<16x64xbf16> to vector<2x8x64xbf16>
    "tpu.trace_start"() <{level = 10 : i32, message = "btd,bud->btu"}> : () -> ()
    %cst_20 = arith.constant dense<0.000000e+00> : vector<2x8x8xf32>
    %68 = tpu.matmul %63, %65, %cst_20 {dimension_numbers = #tpu.dot_dimension_numbers<[2], [2], [1], [1], [0, 0, 0, 1, 1, 1], [0], [0]>} : vector<2x8x64xbf16>, vector<2x8x64xbf16>, vector<2x8x8xf32> -> vector<2x8x8xf32>
    "tpu.trace_stop"() : () -> ()
    %69 = arith.addf %68, %14 : vector<2x8x8xf32>
    %cst_21 = arith.constant dense<0xFF800000> : vector<2x8xf32>
    %70 = vector.multi_reduction <maximumf>, %69, %cst_21 [2] : vector<2x8x8xf32> to vector<2x8xf32>
    %71 = vector.shape_cast %70 : vector<2x8xf32> to vector<2x8x1xf32>
    %72 = vector.broadcast %71 : vector<2x8x1xf32> to vector<2x8x8xf32>
    %73 = arith.subf %69, %72 : vector<2x8x8xf32>
    %74 = math.exp %73 : vector<2x8x8xf32>
    %cst_22 = arith.constant dense<0.000000e+00> : vector<2x8xf32>
    %75 = vector.multi_reduction <add>, %74, %cst_22 [2] : vector<2x8x8xf32> to vector<2x8xf32>
    %76 = vector.shape_cast %75 : vector<2x8xf32> to vector<2x8x1xf32>
    %77 = tpu.reciprocal %76 {approx = true} : vector<2x8x1xf32> -> vector<2x8x1xf32>
    %78 = vector.broadcast %77 : vector<2x8x1xf32> to vector<2x8x8xf32>
    %79 = arith.mulf %74, %78 : vector<2x8x8xf32>
    %80 = arith.truncf %79 : vector<2x8x8xf32> to vector<2x8x8xbf16>
    "tpu.trace_start"() <{level = 10 : i32, message = "btu,bud->btd"}> : () -> ()
    %cst_23 = arith.constant dense<0.000000e+00> : vector<2x8x64xf32>
    %81 = tpu.matmul %80, %67, %cst_23 {dimension_numbers = #tpu.dot_dimension_numbers<[2], [1], [1], [2], [0, 0, 0, 1, 1, 2], [0], [0]>} : vector<2x8x8xbf16>, vector<2x8x64xbf16>, vector<2x8x64xf32> -> vector<2x8x64xf32>
    "tpu.trace_stop"() : () -> ()
    %82 = arith.truncf %81 : vector<2x8x64xf32> to vector<2x8x64xbf16>
    %83 = vector.extract_strided_slice %5 {offsets = [0, 192], sizes = [16, 64], strides = [1, 1]} : vector<16x1152xbf16> to vector<16x64xbf16>
    %84 = vector.shape_cast %83 : vector<16x64xbf16> to vector<2x8x64xbf16>
    %85 = vector.extract_strided_slice %5 {offsets = [0, 576], sizes = [16, 64], strides = [1, 1]} : vector<16x1152xbf16> to vector<16x64xbf16>
    %86 = vector.shape_cast %85 : vector<16x64xbf16> to vector<2x8x64xbf16>
    %87 = vector.extract_strided_slice %5 {offsets = [0, 960], sizes = [16, 64], strides = [1, 1]} : vector<16x1152xbf16> to vector<16x64xbf16>
    %88 = vector.shape_cast %87 : vector<16x64xbf16> to vector<2x8x64xbf16>
    "tpu.trace_start"() <{level = 10 : i32, message = "btd,bud->btu"}> : () -> ()
    %cst_24 = arith.constant dense<0.000000e+00> : vector<2x8x8xf32>
    %89 = tpu.matmul %84, %86, %cst_24 {dimension_numbers = #tpu.dot_dimension_numbers<[2], [2], [1], [1], [0, 0, 0, 1, 1, 1], [0], [0]>} : vector<2x8x64xbf16>, vector<2x8x64xbf16>, vector<2x8x8xf32> -> vector<2x8x8xf32>
    "tpu.trace_stop"() : () -> ()
    %90 = arith.addf %89, %14 : vector<2x8x8xf32>
    %cst_25 = arith.constant dense<0xFF800000> : vector<2x8xf32>
    %91 = vector.multi_reduction <maximumf>, %90, %cst_25 [2] : vector<2x8x8xf32> to vector<2x8xf32>
    %92 = vector.shape_cast %91 : vector<2x8xf32> to vector<2x8x1xf32>
    %93 = vector.broadcast %92 : vector<2x8x1xf32> to vector<2x8x8xf32>
    %94 = arith.subf %90, %93 : vector<2x8x8xf32>
    %95 = math.exp %94 : vector<2x8x8xf32>
    %cst_26 = arith.constant dense<0.000000e+00> : vector<2x8xf32>
    %96 = vector.multi_reduction <add>, %95, %cst_26 [2] : vector<2x8x8xf32> to vector<2x8xf32>
    %97 = vector.shape_cast %96 : vector<2x8xf32> to vector<2x8x1xf32>
    %98 = tpu.reciprocal %97 {approx = true} : vector<2x8x1xf32> -> vector<2x8x1xf32>
    %99 = vector.broadcast %98 : vector<2x8x1xf32> to vector<2x8x8xf32>
    %100 = arith.mulf %95, %99 : vector<2x8x8xf32>
    %101 = arith.truncf %100 : vector<2x8x8xf32> to vector<2x8x8xbf16>
    "tpu.trace_start"() <{level = 10 : i32, message = "btu,bud->btd"}> : () -> ()
    %cst_27 = arith.constant dense<0.000000e+00> : vector<2x8x64xf32>
    %102 = tpu.matmul %101, %88, %cst_27 {dimension_numbers = #tpu.dot_dimension_numbers<[2], [1], [1], [2], [0, 0, 0, 1, 1, 2], [0], [0]>} : vector<2x8x8xbf16>, vector<2x8x64xbf16>, vector<2x8x64xf32> -> vector<2x8x64xf32>
    "tpu.trace_stop"() : () -> ()
    %103 = arith.truncf %102 : vector<2x8x64xf32> to vector<2x8x64xbf16>
    %104 = tpu.concatenate %82, %103 in 2 : vector<2x8x64xbf16>, vector<2x8x64xbf16> -> vector<2x8x128xbf16>
    %105 = vector.shape_cast %104 : vector<2x8x128xbf16> to vector<16x128xbf16>
    %c0_28 = arith.constant 0 : index
    %c128 = arith.constant 128 : index
    %106 = vector.load %arg6[%c0_28, %c128] : memref<16x384xbf16, #tpu.memory_space<vmem>>, vector<16x128xbf16>
    tpu.vector_store %arg6[%c0_28, %c128], %105 {strides = array<i32>} : memref<16x384xbf16, #tpu.memory_space<vmem>>, vector<16x128xbf16>,
    %107 = vector.extract_strided_slice %5 {offsets = [0, 256], sizes = [16, 64], strides = [1, 1]} : vector<16x1152xbf16> to vector<16x64xbf16>
    %108 = vector.shape_cast %107 : vector<16x64xbf16> to vector<2x8x64xbf16>
    %109 = vector.extract_strided_slice %5 {offsets = [0, 640], sizes = [16, 64], strides = [1, 1]} : vector<16x1152xbf16> to vector<16x64xbf16>
    %110 = vector.shape_cast %109 : vector<16x64xbf16> to vector<2x8x64xbf16>
    %111 = vector.extract_strided_slice %5 {offsets = [0, 1024], sizes = [16, 64], strides = [1, 1]} : vector<16x1152xbf16> to vector<16x64xbf16>
    %112 = vector.shape_cast %111 : vector<16x64xbf16> to vector<2x8x64xbf16>
    "tpu.trace_start"() <{level = 10 : i32, message = "btd,bud->btu"}> : () -> ()
    %cst_29 = arith.constant dense<0.000000e+00> : vector<2x8x8xf32>
    %113 = tpu.matmul %108, %110, %cst_29 {dimension_numbers = #tpu.dot_dimension_numbers<[2], [2], [1], [1], [0, 0, 0, 1, 1, 1], [0], [0]>} : vector<2x8x64xbf16>, vector<2x8x64xbf16>, vector<2x8x8xf32> -> vector<2x8x8xf32>
    "tpu.trace_stop"() : () -> ()
    %114 = arith.addf %113, %14 : vector<2x8x8xf32>
    %cst_30 = arith.constant dense<0xFF800000> : vector<2x8xf32>
    %115 = vector.multi_reduction <maximumf>, %114, %cst_30 [2] : vector<2x8x8xf32> to vector<2x8xf32>
    %116 = vector.shape_cast %115 : vector<2x8xf32> to vector<2x8x1xf32>
    %117 = vector.broadcast %116 : vector<2x8x1xf32> to vector<2x8x8xf32>
    %118 = arith.subf %114, %117 : vector<2x8x8xf32>
    %119 = math.exp %118 : vector<2x8x8xf32>
    %cst_31 = arith.constant dense<0.000000e+00> : vector<2x8xf32>
    %120 = vector.multi_reduction <add>, %119, %cst_31 [2] : vector<2x8x8xf32> to vector<2x8xf32>
    %121 = vector.shape_cast %120 : vector<2x8xf32> to vector<2x8x1xf32>
    %122 = tpu.reciprocal %121 {approx = true} : vector<2x8x1xf32> -> vector<2x8x1xf32>
    %123 = vector.broadcast %122 : vector<2x8x1xf32> to vector<2x8x8xf32>
    %124 = arith.mulf %119, %123 : vector<2x8x8xf32>
    %125 = arith.truncf %124 : vector<2x8x8xf32> to vector<2x8x8xbf16>
    "tpu.trace_start"() <{level = 10 : i32, message = "btu,bud->btd"}> : () -> ()
    %cst_32 = arith.constant dense<0.000000e+00> : vector<2x8x64xf32>
    %126 = tpu.matmul %125, %112, %cst_32 {dimension_numbers = #tpu.dot_dimension_numbers<[2], [1], [1], [2], [0, 0, 0, 1, 1, 2], [0], [0]>} : vector<2x8x8xbf16>, vector<2x8x64xbf16>, vector<2x8x64xf32> -> vector<2x8x64xf32>
    "tpu.trace_stop"() : () -> ()
    %127 = arith.truncf %126 : vector<2x8x64xf32> to vector<2x8x64xbf16>
    %128 = vector.extract_strided_slice %5 {offsets = [0, 320], sizes = [16, 64], strides = [1, 1]} : vector<16x1152xbf16> to vector<16x64xbf16>
    %129 = vector.shape_cast %128 : vector<16x64xbf16> to vector<2x8x64xbf16>
    %130 = vector.extract_strided_slice %5 {offsets = [0, 704], sizes = [16, 64], strides = [1, 1]} : vector<16x1152xbf16> to vector<16x64xbf16>
    %131 = vector.shape_cast %130 : vector<16x64xbf16> to vector<2x8x64xbf16>
    %132 = vector.extract_strided_slice %5 {offsets = [0, 1088], sizes = [16, 64], strides = [1, 1]} : vector<16x1152xbf16> to vector<16x64xbf16>
    %133 = vector.shape_cast %132 : vector<16x64xbf16> to vector<2x8x64xbf16>
    "tpu.trace_start"() <{level = 10 : i32, message = "btd,bud->btu"}> : () -> ()
    %cst_33 = arith.constant dense<0.000000e+00> : vector<2x8x8xf32>
    %134 = tpu.matmul %129, %131, %cst_33 {dimension_numbers = #tpu.dot_dimension_numbers<[2], [2], [1], [1], [0, 0, 0, 1, 1, 1], [0], [0]>} : vector<2x8x64xbf16>, vector<2x8x64xbf16>, vector<2x8x8xf32> -> vector<2x8x8xf32>
    "tpu.trace_stop"() : () -> ()
    %135 = arith.addf %134, %14 : vector<2x8x8xf32>
    %cst_34 = arith.constant dense<0xFF800000> : vector<2x8xf32>
    %136 = vector.multi_reduction <maximumf>, %135, %cst_34 [2] : vector<2x8x8xf32> to vector<2x8xf32>
    %137 = vector.shape_cast %136 : vector<2x8xf32> to vector<2x8x1xf32>
    %138 = vector.broadcast %137 : vector<2x8x1xf32> to vector<2x8x8xf32>
    %139 = arith.subf %135, %138 : vector<2x8x8xf32>
    %140 = math.exp %139 : vector<2x8x8xf32>
    %cst_35 = arith.constant dense<0.000000e+00> : vector<2x8xf32>
    %141 = vector.multi_reduction <add>, %140, %cst_35 [2] : vector<2x8x8xf32> to vector<2x8xf32>
    %142 = vector.shape_cast %141 : vector<2x8xf32> to vector<2x8x1xf32>
    %143 = tpu.reciprocal %142 {approx = true} : vector<2x8x1xf32> -> vector<2x8x1xf32>
    %144 = vector.broadcast %143 : vector<2x8x1xf32> to vector<2x8x8xf32>
    %145 = arith.mulf %140, %144 : vector<2x8x8xf32>
    %146 = arith.truncf %145 : vector<2x8x8xf32> to vector<2x8x8xbf16>
    "tpu.trace_start"() <{level = 10 : i32, message = "btu,bud->btd"}> : () -> ()
    %cst_36 = arith.constant dense<0.000000e+00> : vector<2x8x64xf32>
    %147 = tpu.matmul %146, %133, %cst_36 {dimension_numbers = #tpu.dot_dimension_numbers<[2], [1], [1], [2], [0, 0, 0, 1, 1, 2], [0], [0]>} : vector<2x8x8xbf16>, vector<2x8x64xbf16>, vector<2x8x64xf32> -> vector<2x8x64xf32>
    "tpu.trace_stop"() : () -> ()
    %148 = arith.truncf %147 : vector<2x8x64xf32> to vector<2x8x64xbf16>
    %149 = tpu.concatenate %127, %148 in 2 : vector<2x8x64xbf16>, vector<2x8x64xbf16> -> vector<2x8x128xbf16>
    %150 = vector.shape_cast %149 : vector<2x8x128xbf16> to vector<16x128xbf16>
    %c0_37 = arith.constant 0 : index
    %c256 = arith.constant 256 : index
    %151 = vector.load %arg6[%c0_37, %c256] : memref<16x384xbf16, #tpu.memory_space<vmem>>, vector<16x128xbf16>
    tpu.vector_store %arg6[%c0_37, %c256], %150 {strides = array<i32>} : memref<16x384xbf16, #tpu.memory_space<vmem>>, vector<16x128xbf16>,
    %c0_38 = arith.constant 0 : index
    %c0_39 = arith.constant 0 : index
    %152 = vector.load %arg6[%c0_38, %c0_39] : memref<16x384xbf16, #tpu.memory_space<vmem>>, vector<16x384xbf16>
    %cst_40 = arith.constant dense<0.000000e+00> : vector<16x384xf32>
    %153 = tpu.matmul %152, %15, %cst_40 {dimension_numbers = #tpu.dot_dimension_numbers<[1], [0], [0], [1], [0, 0, 1, 1], [], []>} : vector<16x384xbf16>, vector<384x384xbf16>, vector<16x384xf32> -> vector<16x384xf32>
    %154 = vector.broadcast %16 : vector<1x384xf32> to vector<16x384xf32>
    %155 = arith.addf %153, %154 : vector<16x384xf32>
    %156 = vector.shape_cast %155 : vector<16x384xf32> to vector<2x8x384xf32>
    %c0_41 = arith.constant 0 : index
    %c0_42 = arith.constant 0 : index
    %c0_43 = arith.constant 0 : index
    %157 = vector.load %arg5[%c0_41, %c0_42, %c0_43] : memref<2x8x384xf32, #tpu.memory_space<vmem>>, vector<2x8x384xf32>
    tpu.vector_store %arg5[%c0_41, %c0_42, %c0_43], %156 {strides = array<i32>} : memref<2x8x384xf32, #tpu.memory_space<vmem>>, vector<2x8x384xf32>,
    return
  }
  func.func @transform_0(%arg0: i32) -> (i32, i32, i32) {
    %c0_i32 = arith.constant 0 : i32
    %c0_i32_0 = arith.constant 0 : i32
    %c0_i32_1 = arith.constant 0 : i32
    return %arg0, %c0_i32, %c0_i32_0 : i32, i32, i32
  }
  func.func @transform_1(%arg0: i32) -> (i32, i32) {
    %c0_i32 = arith.constant 0 : i32
    %c0_i32_0 = arith.constant 0 : i32
    %c0_i32_1 = arith.constant 0 : i32
    return %c0_i32, %c0_i32_0 : i32, i32
  }
  func.func @transform_2(%arg0: i32) -> (i32, i32) {
    %c0_i32 = arith.constant 0 : i32
    %c0_i32_0 = arith.constant 0 : i32
    %c0_i32_1 = arith.constant 0 : i32
    return %c0_i32, %c0_i32_0 : i32, i32
  }
  func.func @transform_3(%arg0: i32) -> (i32, i32) {
    %c0_i32 = arith.constant 0 : i32
    %c0_i32_0 = arith.constant 0 : i32
    %c0_i32_1 = arith.constant 0 : i32
    return %c0_i32, %c0_i32_0 : i32, i32
  }
  func.func @transform_4(%arg0: i32) -> (i32, i32, i32) {
    %c0_i32 = arith.constant 0 : i32
    %c0_i32_0 = arith.constant 0 : i32
    %c0_i32_1 = arith.constant 0 : i32
    return %arg0, %c0_i32, %c0_i32_0 : i32, i32, i32
  }
}

</mosaic_0001>

<llo_original>
// kernel: tpu_custom_call.1
$region0: #{tpu_custom_call.1}
  #allocation0 [shape = 'u32[]', space=smem, size = 0x4, offset = 0x4, fixed_abs, tag = 'smem constant byte address 0x4 - core index']
  #allocation1 [shape = 'u32[72,128]{1,0:T(1,128)}', space=vmem, size = 0x9000, scoped, tag = 'internal scratch']
  #allocation2 [shape = 'bf16[16,384]{1,0:T(8,128)(2,1)}', space=vmem, size = 0x3000, scoped, tag = 'scratch operand']
  %s0 = inlined_call_operand.hbm [shape: f32[2,8,384], index: 0, kind: input, shape index: {}]
  %s1 = inlined_call_operand.hbm [shape: bf16[384,1152], index: 1, kind: input, shape index: {}]
  %s2 = inlined_call_operand.hbm [shape: bf16[384,384], index: 2, kind: input, shape index: {}]
  %s3 = inlined_call_operand.hbm [shape: f32[1,384], index: 3, kind: input, shape index: {}]
  %s4 = inlined_call_operand.hbm [shape: f32[2,8,384], index: 4, kind: output, shape index: {}]
  %s5 = sld [smem:[#allocation0]]
  $region42: #{tpu_custom_call.1} parent=0
    _
  %s7 = ssub.s32 1, %s5
  %s8 = scalar_select 0, %s7, %s5
  $region1: #{tpu_custom_call.1} parent=0
    #allocation3 [shape = 'u8[24576]{0}', space=vmem, size = 0x6000, scoped, tag = 'input window, operand 0, single buffered']
    #allocation4 [shape = 's32[1]{0}', space=sflag, size = 0x4, scoped, tag = 'scoped memory for tpu_custom_call.1']
    #allocation5 [shape = 's32[1]{0}', space=sflag, size = 0x4, scoped, tag = 'scoped memory for tpu_custom_call.1']
    #allocation6 [shape = 'u8[884736]{0}', space=vmem, size = 0xd8000, scoped, tag = 'input window, operand 1, single buffered']
    #allocation7 [shape = 's32[1]{0}', space=sflag, size = 0x4, scoped, tag = 'scoped memory for tpu_custom_call.1']
    #allocation8 [shape = 'u8[294912]{0}', space=vmem, size = 0x48000, scoped, tag = 'input window, operand 2, single buffered']
    #allocation9 [shape = 'u8[1536]{0}', space=vmem, size = 0x800, scoped, tag = 'input window, operand 3, single buffered']
    #allocation10 [shape = 's32[1]{0}', space=sflag, size = 0x4, scoped, tag = 'scoped memory for tpu_custom_call.1']
    #allocation11 [shape = 'u8[24576]{0}', space=vmem, size = 0x6000, scoped, tag = 'output window, operand 0, single buffered']
    %9 = vsyncpa [#allocation4], 0
    %10 = vsyncpa [#allocation7], 0
    %11 = vsyncpa [#allocation10], 0
    %12 = vsyncpa [#allocation5], 0
    // Predicated region
    $region2: #{tpu_custom_call.1} parent=1 // pred_check
      _
    $region3: #{tpu_custom_call.1} parent=1 // pred_check_branch
      %14 = sbr.rel (0) target = $region5
    $region4: #{tpu_custom_call.1} parent=1 // pred_region
      %16 = vsyncadd [#allocation4], 0
      %s17 = sshll.u32 %s0, 4
      %s18 = int_to_ptr.hbm [resolvable:$true] %s17
      %s19 = sshll.u32 [#allocation3], 4
      %s20 = int_to_ptr.vmem [resolvable:$true] %s19
      %25 = dma.hbm_to_vmem [thread:$0]  %s18, 768, %s20, [#allocation4], 384, 384, 24
    $region5: #{tpu_custom_call.1} parent=1 // pred_fallthru
      _
    // Predicated region
    $region6: #{tpu_custom_call.1} parent=1 // pred_check
      _
    $region7: #{tpu_custom_call.1} parent=1 // pred_check_branch
      %27 = sbr.rel (0) target = $region9
    $region8: #{tpu_custom_call.1} parent=1 // pred_region
      %29 = vsyncadd [#allocation7], 0
      %s30 = sshll.u32 %s1, 4
      %s31 = int_to_ptr.hbm [resolvable:$true] %s30
      %s32 = sshll.u32 [#allocation6], 4
      %s33 = int_to_ptr.vmem [resolvable:$true] %s32
      %38 = dma.hbm_to_vmem [thread:$0]  %s31, 27648, %s33, [#allocation7], 576, 576, 36
    $region9: #{tpu_custom_call.1} parent=1 // pred_fallthru
      _
    // Predicated region
    $region10: #{tpu_custom_call.1} parent=1 // pred_check
      _
    $region11: #{tpu_custom_call.1} parent=1 // pred_check_branch
      %40 = sbr.rel (0) target = $region13
    $region12: #{tpu_custom_call.1} parent=1 // pred_region
      %42 = vsyncadd [#allocation7], 0
      %s43 = sshll.u32 %s2, 4
      %s44 = int_to_ptr.hbm [resolvable:$true] %s43
      %s45 = sshll.u32 [#allocation8], 4
      %s46 = int_to_ptr.vmem [resolvable:$true] %s45
      %51 = dma.hbm_to_vmem [thread:$0]  %s44, 9216, %s46, [#allocation7], 192, 192, 12
    $region13: #{tpu_custom_call.1} parent=1 // pred_fallthru
      _
    // Predicated region
    $region14: #{tpu_custom_call.1} parent=1 // pred_check
      _
    $region15: #{tpu_custom_call.1} parent=1 // pred_check_branch
      %53 = sbr.rel (0) target = $region17
    $region16: #{tpu_custom_call.1} parent=1 // pred_region
      %55 = vsyncadd [#allocation10], 0
      %s57 = sshll.u32 %s3, 4
      %s58 = int_to_ptr.hbm [resolvable:$true] %s57
      %s59 = sshll.u32 [#allocation9], 4
      %s60 = int_to_ptr.vmem [resolvable:$true] %s59
      %62 = dma.hbm_to_vmem [thread:$0]  %s58, 48, %s60, [#allocation10]
    $region17: #{tpu_custom_call.1} parent=1 // pred_fallthru
      _
    // Predicated region
    $region18: #{tpu_custom_call.1} parent=1 // pred_check
      _
    $region19: #{tpu_custom_call.1} parent=1 // pred_check_branch
      %64 = sbr.rel (0) target = $region21
    $region20: #{tpu_custom_call.1} parent=1 // pred_region
      %66 = dma.done [#allocation4], 768
    $region21: #{tpu_custom_call.1} parent=1 // pred_fallthru
      _
    // Predicated region
    $region22: #{tpu_custom_call.1} parent=1 // pred_check
      _
    $region23: #{tpu_custom_call.1} parent=1 // pred_check_branch
      %68 = sbr.rel (0) target = $region25
    $region24: #{tpu_custom_call.1} parent=1 // pred_region
      %70 = dma.done [#allocation7], 27648
    $region25: #{tpu_custom_call.1} parent=1 // pred_fallthru
      _
    // Predicated region
    $region26: #{tpu_custom_call.1} parent=1 // pred_check
      _
    $region27: #{tpu_custom_call.1} parent=1 // pred_check_branch
      %72 = sbr.rel (0) target = $region29
    $region28: #{tpu_custom_call.1} parent=1 // pred_region
      %74 = dma.done [#allocation7], 9216
    $region29: #{tpu_custom_call.1} parent=1 // pred_fallthru
      _
    // Predicated region
    $region30: #{tpu_custom_call.1} parent=1 // pred_check
      _
    $region31: #{tpu_custom_call.1} parent=1 // pred_check_branch
      %76 = sbr.rel (0) target = $region33
    $region32: #{tpu_custom_call.1} parent=1 // pred_region
      %78 = dma.done [#allocation10], 48
    $region33: #{tpu_custom_call.1} parent=1 // pred_fallthru
      _
    %v80 = vld [vmem:[#allocation3] sm:$0xff]
    %v81 = vld [vmem:[#allocation3 + $0x8] sm:$0xff]
    %v82 = vld [vmem:[#allocation3 + $0x10] sm:$0xff]
    %v83 = vld [vmem:[#allocation3 + $0x18] sm:$0xff]
    %v84 = vld [vmem:[#allocation3 + $0x20] sm:$0xff]
    %v85 = vld [vmem:[#allocation3 + $0x28] sm:$0xff]
    %v86 = vpack.c.bf16 %v83, %v80
    %v87 = vpack.c.bf16 %v84, %v81
    %v88 = vpack.c.bf16 %v85, %v82
    %v89 = vld [vmem:[#allocation6] sm:$0xff]
    %v90 = vld [vmem:[#allocation6 + $0x8] sm:$0xff]
    %v91 = vld [vmem:[#allocation6 + $0x10] sm:$0xff]
    %v92 = vld [vmem:[#allocation6 + $0x18] sm:$0xff]
    %v93 = vld [vmem:[#allocation6 + $0x20] sm:$0xf]
    %v94 = vld [vmem:[#allocation6 + $0x24] sm:$0xff]
    %v95 = vld [vmem:[#allocation6 + $0x2c] sm:$0xff]
    %v96 = vld [vmem:[#allocation6 + $0x34] sm:$0xff]
    %v97 = vld [vmem:[#allocation6 + $0x3c] sm:$0xff]
    %v98 = vld [vmem:[#allocation6 + $0x44] sm:$0xf]
    %v99 = vld [vmem:[#allocation6 + $0x48] sm:$0xff]
    %v100 = vld [vmem:[#allocation6 + $0x50] sm:$0xff]
    %v101 = vld [vmem:[#allocation6 + $0x58] sm:$0xff]
    %v102 = vld [vmem:[#allocation6 + $0x60] sm:$0xff]
    %v103 = vld [vmem:[#allocation6 + $0x68] sm:$0xf]
    %v104 = vld [vmem:[#allocation6 + $0x6c] sm:$0xff]
    %v105 = vld [vmem:[#allocation6 + $0x74] sm:$0xff]
    %v106 = vld [vmem:[#allocation6 + $0x7c] sm:$0xff]
    %v107 = vld [vmem:[#allocation6 + $0x84] sm:$0xff]
    %v108 = vld [vmem:[#allocation6 + $0x8c] sm:$0xf]
    %v109 = vld [vmem:[#allocation6 + $0x90] sm:$0xff]
    %v110 = vld [vmem:[#allocation6 + $0x98] sm:$0xff]
    %v111 = vld [vmem:[#allocation6 + $0xa0] sm:$0xff]
    %v112 = vld [vmem:[#allocation6 + $0xa8] sm:$0xff]
    %v113 = vld [vmem:[#allocation6 + $0xb0] sm:$0xf]
    %v114 = vld [vmem:[#allocation6 + $0xb4] sm:$0xff]
    %v115 = vld [vmem:[#allocation6 + $0xbc] sm:$0xff]
    %v116 = vld [vmem:[#allocation6 + $0xc4] sm:$0xff]
    %v117 = vld [vmem:[#allocation6 + $0xcc] sm:$0xff]
    %v118 = vld [vmem:[#allocation6 + $0xd4] sm:$0xf]
    %v119 = vld [vmem:[#allocation6 + $0xd8] sm:$0xff]
    %v120 = vld [vmem:[#allocation6 + $0xe0] sm:$0xff]
    %v121 = vld [vmem:[#allocation6 + $0xe8] sm:$0xff]
    %v122 = vld [vmem:[#allocation6 + $0xf0] sm:$0xff]
    %v123 = vld [vmem:[#allocation6 + $0xf8] sm:$0xf]
    %v124 = vld [vmem:[#allocation6 + $0xfc] sm:$0xff]
    %v125 = vld [vmem:[#allocation6 + $0x104] sm:$0xff]
    %v126 = vld [vmem:[#allocation6 + $0x10c] sm:$0xff]
    %v127 = vld [vmem:[#allocation6 + $0x114] sm:$0xff]
    %v128 = vld [vmem:[#allocation6 + $0x11c] sm:$0xf]
    %v129 = vld [vmem:[#allocation6 + $0x120] sm:$0xff]
    %v130 = vld [vmem:[#allocation6 + $0x128] sm:$0xff]
    %v131 = vld [vmem:[#allocation6 + $0x130] sm:$0xff]
    %v132 = vld [vmem:[#allocation6 + $0x138] sm:$0xff]
    %v133 = vld [vmem:[#allocation6 + $0x140] sm:$0xf]
    %v134 = vld [vmem:[#allocation6 + $0x144] sm:$0xff]
    %v135 = vld [vmem:[#allocation6 + $0x14c] sm:$0xff]
    %v136 = vld [vmem:[#allocation6 + $0x154] sm:$0xff]
    %v137 = vld [vmem:[#allocation6 + $0x15c] sm:$0xff]
    %v138 = vld [vmem:[#allocation6 + $0x164] sm:$0xf]
    %v139 = vld [vmem:[#allocation6 + $0x168] sm:$0xff]
    %v140 = vld [vmem:[#allocation6 + $0x170] sm:$0xff]
    %v141 = vld [vmem:[#allocation6 + $0x178] sm:$0xff]
    %v142 = vld [vmem:[#allocation6 + $0x180] sm:$0xff]
    %v143 = vld [vmem:[#allocation6 + $0x188] sm:$0xf]
    %v144 = vld [vmem:[#allocation6 + $0x18c] sm:$0xff]
    %v145 = vld [vmem:[#allocation6 + $0x194] sm:$0xff]
    %v146 = vld [vmem:[#allocation6 + $0x19c] sm:$0xff]
    %v147 = vld [vmem:[#allocation6 + $0x1a4] sm:$0xff]
    %v148 = vld [vmem:[#allocation6 + $0x1ac] sm:$0xf]
    %v149 = vld [vmem:[#allocation6 + $0x1b0] sm:$0xff]
    %v150 = vld [vmem:[#allocation6 + $0x1b8] sm:$0xff]
    %v151 = vld [vmem:[#allocation6 + $0x1c0] sm:$0xff]
    %v152 = vld [vmem:[#allocation6 + $0x1c8] sm:$0xff]
    %v153 = vld [vmem:[#allocation6 + $0x1d0] sm:$0xf]
    %v154 = vld [vmem:[#allocation6 + $0x1d4] sm:$0xff]
    %v155 = vld [vmem:[#allocation6 + $0x1dc] sm:$0xff]
    %v156 = vld [vmem:[#allocation6 + $0x1e4] sm:$0xff]
    %v157 = vld [vmem:[#allocation6 + $0x1ec] sm:$0xff]
    %v158 = vld [vmem:[#allocation6 + $0x1f4] sm:$0xf]
    %v159 = vld [vmem:[#allocation6 + $0x1f8] sm:$0xff]
    %v160 = vld [vmem:[#allocation6 + $0x200] sm:$0xff]
    %v161 = vld [vmem:[#allocation6 + $0x208] sm:$0xff]
    %v162 = vld [vmem:[#allocation6 + $0x210] sm:$0xff]
    %v163 = vld [vmem:[#allocation6 + $0x218] sm:$0xf]
    %v164 = vld [vmem:[#allocation6 + $0x21c] sm:$0xff]
    %v165 = vld [vmem:[#allocation6 + $0x224] sm:$0xff]
    %v166 = vld [vmem:[#allocation6 + $0x22c] sm:$0xff]
    %v167 = vld [vmem:[#allocation6 + $0x234] sm:$0xff]
    %v168 = vld [vmem:[#allocation6 + $0x23c] sm:$0xf]
    %v169 = vld [vmem:[#allocation6 + $0x240] sm:$0xff]
    %v170 = vld [vmem:[#allocation6 + $0x248] sm:$0xff]
    %v171 = vld [vmem:[#allocation6 + $0x250] sm:$0xff]
    %v172 = vld [vmem:[#allocation6 + $0x258] sm:$0xff]
    %v173 = vld [vmem:[#allocation6 + $0x260] sm:$0xf]
    %v174 = vld [vmem:[#allocation6 + $0x264] sm:$0xff]
    %v175 = vld [vmem:[#allocation6 + $0x26c] sm:$0xff]
    %v176 = vld [vmem:[#allocation6 + $0x274] sm:$0xff]
    %v177 = vld [vmem:[#allocation6 + $0x27c] sm:$0xff]
    %v178 = vld [vmem:[#allocation6 + $0x284] sm:$0xf]
    %v179 = vld [vmem:[#allocation6 + $0x288] sm:$0xff]
    %v180 = vld [vmem:[#allocation6 + $0x290] sm:$0xff]
    %v181 = vld [vmem:[#allocation6 + $0x298] sm:$0xff]
    %v182 = vld [vmem:[#allocation6 + $0x2a0] sm:$0xff]
    %v183 = vld [vmem:[#allocation6 + $0x2a8] sm:$0xf]
    %v184 = vld [vmem:[#allocation6 + $0x2ac] sm:$0xff]
    %v185 = vld [vmem:[#allocation6 + $0x2b4] sm:$0xff]
    %v186 = vld [vmem:[#allocation6 + $0x2bc] sm:$0xff]
    %v187 = vld [vmem:[#allocation6 + $0x2c4] sm:$0xff]
    %v188 = vld [vmem:[#allocation6 + $0x2cc] sm:$0xf]
    %v189 = vld [vmem:[#allocation6 + $0x2d0] sm:$0xff]
    %v190 = vld [vmem:[#allocation6 + $0x2d8] sm:$0xff]
    %v191 = vld [vmem:[#allocation6 + $0x2e0] sm:$0xff]
    %v192 = vld [vmem:[#allocation6 + $0x2e8] sm:$0xff]
    %v193 = vld [vmem:[#allocation6 + $0x2f0] sm:$0xf]
    %v194 = vld [vmem:[#allocation6 + $0x2f4] sm:$0xff]
    %v195 = vld [vmem:[#allocation6 + $0x2fc] sm:$0xff]
    %v196 = vld [vmem:[#allocation6 + $0x304] sm:$0xff]
    %v197 = vld [vmem:[#allocation6 + $0x30c] sm:$0xff]
    %v198 = vld [vmem:[#allocation6 + $0x314] sm:$0xf]
    %v199 = vld [vmem:[#allocation6 + $0x318] sm:$0xff]
    %v200 = vld [vmem:[#allocation6 + $0x320] sm:$0xff]
    %v201 = vld [vmem:[#allocation6 + $0x328] sm:$0xff]
    %v202 = vld [vmem:[#allocation6 + $0x330] sm:$0xff]
    %v203 = vld [vmem:[#allocation6 + $0x338] sm:$0xf]
    %v204 = vld [vmem:[#allocation6 + $0x33c] sm:$0xff]
    %v205 = vld [vmem:[#allocation6 + $0x344] sm:$0xff]
    %v206 = vld [vmem:[#allocation6 + $0x34c] sm:$0xff]
    %v207 = vld [vmem:[#allocation6 + $0x354] sm:$0xff]
    %v208 = vld [vmem:[#allocation6 + $0x35c] sm:$0xf]
    %v209 = vld [vmem:[#allocation6 + $0x360] sm:$0xff]
    %v210 = vld [vmem:[#allocation6 + $0x368] sm:$0xff]
    %v211 = vld [vmem:[#allocation6 + $0x370] sm:$0xff]
    %v212 = vld [vmem:[#allocation6 + $0x378] sm:$0xff]
    %v213 = vld [vmem:[#allocation6 + $0x380] sm:$0xf]
    %v214 = vld [vmem:[#allocation6 + $0x384] sm:$0xff]
    %v215 = vld [vmem:[#allocation6 + $0x38c] sm:$0xff]
    %v216 = vld [vmem:[#allocation6 + $0x394] sm:$0xff]
    %v217 = vld [vmem:[#allocation6 + $0x39c] sm:$0xff]
    %v218 = vld [vmem:[#allocation6 + $0x3a4] sm:$0xf]
    %v219 = vld [vmem:[#allocation6 + $0x3a8] sm:$0xff]
    %v220 = vld [vmem:[#allocation6 + $0x3b0] sm:$0xff]
    %v221 = vld [vmem:[#allocation6 + $0x3b8] sm:$0xff]
    %v222 = vld [vmem:[#allocation6 + $0x3c0] sm:$0xff]
    %v223 = vld [vmem:[#allocation6 + $0x3c8] sm:$0xf]
    %v224 = vld [vmem:[#allocation6 + $0x3cc] sm:$0xff]
    %v225 = vld [vmem:[#allocation6 + $0x3d4] sm:$0xff]
    %v226 = vld [vmem:[#allocation6 + $0x3dc] sm:$0xff]
    %v227 = vld [vmem:[#allocation6 + $0x3e4] sm:$0xff]
    %v228 = vld [vmem:[#allocation6 + $0x3ec] sm:$0xf]
    %v229 = vld [vmem:[#allocation6 + $0x3f0] sm:$0xff]
    %v230 = vld [vmem:[#allocation6 + $0x3f8] sm:$0xff]
    %v231 = vld [vmem:[#allocation6 + $0x400] sm:$0xff]
    %v232 = vld [vmem:[#allocation6 + $0x408] sm:$0xff]
    %v233 = vld [vmem:[#allocation6 + $0x410] sm:$0xf]
    %v234 = vld [vmem:[#allocation6 + $0x414] sm:$0xff]
    %v235 = vld [vmem:[#allocation6 + $0x41c] sm:$0xff]
    %v236 = vld [vmem:[#allocation6 + $0x424] sm:$0xff]
    %v237 = vld [vmem:[#allocation6 + $0x42c] sm:$0xff]
    %v238 = vld [vmem:[#allocation6 + $0x434] sm:$0xf]
    %v239 = vld [vmem:[#allocation6 + $0x438] sm:$0xff]
    %v240 = vld [vmem:[#allocation6 + $0x440] sm:$0xff]
    %v241 = vld [vmem:[#allocation6 + $0x448] sm:$0xff]
    %v242 = vld [vmem:[#allocation6 + $0x450] sm:$0xff]
    %v243 = vld [vmem:[#allocation6 + $0x458] sm:$0xf]
    %v244 = vld [vmem:[#allocation6 + $0x45c] sm:$0xff]
    %v245 = vld [vmem:[#allocation6 + $0x464] sm:$0xff]
    %v246 = vld [vmem:[#allocation6 + $0x46c] sm:$0xff]
    %v247 = vld [vmem:[#allocation6 + $0x474] sm:$0xff]
    %v248 = vld [vmem:[#allocation6 + $0x47c] sm:$0xf]
    %v249 = vld [vmem:[#allocation6 + $0x480] sm:$0xff]
    %v250 = vld [vmem:[#allocation6 + $0x488] sm:$0xff]
    %v251 = vld [vmem:[#allocation6 + $0x490] sm:$0xff]
    %v252 = vld [vmem:[#allocation6 + $0x498] sm:$0xff]
    %v253 = vld [vmem:[#allocation6 + $0x4a0] sm:$0xf]
    %v254 = vld [vmem:[#allocation6 + $0x4a4] sm:$0xff]
    %v255 = vld [vmem:[#allocation6 + $0x4ac] sm:$0xff]
    %v256 = vld [vmem:[#allocation6 + $0x4b4] sm:$0xff]
    %v257 = vld [vmem:[#allocation6 + $0x4bc] sm:$0xff]
    %v258 = vld [vmem:[#allocation6 + $0x4c4] sm:$0xf]
    %v259 = vld [vmem:[#allocation6 + $0x4c8] sm:$0xff]
    %v260 = vld [vmem:[#allocation6 + $0x4d0] sm:$0xff]
    %v261 = vld [vmem:[#allocation6 + $0x4d8] sm:$0xff]
    %v262 = vld [vmem:[#allocation6 + $0x4e0] sm:$0xff]
    %v263 = vld [vmem:[#allocation6 + $0x4e8] sm:$0xf]
    %v264 = vld [vmem:[#allocation6 + $0x4ec] sm:$0xff]
    %v265 = vld [vmem:[#allocation6 + $0x4f4] sm:$0xff]
    %v266 = vld [vmem:[#allocation6 + $0x4fc] sm:$0xff]
    %v267 = vld [vmem:[#allocation6 + $0x504] sm:$0xff]
    %v268 = vld [vmem:[#allocation6 + $0x50c] sm:$0xf]
    %v269 = vld [vmem:[#allocation6 + $0x510] sm:$0xff]
    %v270 = vld [vmem:[#allocation6 + $0x518] sm:$0xff]
    %v271 = vld [vmem:[#allocation6 + $0x520] sm:$0xff]
    %v272 = vld [vmem:[#allocation6 + $0x528] sm:$0xff]
    %v273 = vld [vmem:[#allocation6 + $0x530] sm:$0xf]
    %v274 = vld [vmem:[#allocation6 + $0x534] sm:$0xff]
    %v275 = vld [vmem:[#allocation6 + $0x53c] sm:$0xff]
    %v276 = vld [vmem:[#allocation6 + $0x544] sm:$0xff]
    %v277 = vld [vmem:[#allocation6 + $0x54c] sm:$0xff]
    %v278 = vld [vmem:[#allocation6 + $0x554] sm:$0xf]
    %v279 = vld [vmem:[#allocation6 + $0x558] sm:$0xff]
    %v280 = vld [vmem:[#allocation6 + $0x560] sm:$0xff]
    %v281 = vld [vmem:[#allocation6 + $0x568] sm:$0xff]
    %v282 = vld [vmem:[#allocation6 + $0x570] sm:$0xff]
    %v283 = vld [vmem:[#allocation6 + $0x578] sm:$0xf]
    %v284 = vld [vmem:[#allocation6 + $0x57c] sm:$0xff]
    %v285 = vld [vmem:[#allocation6 + $0x584] sm:$0xff]
    %v286 = vld [vmem:[#allocation6 + $0x58c] sm:$0xff]
    %v287 = vld [vmem:[#allocation6 + $0x594] sm:$0xff]
    %v288 = vld [vmem:[#allocation6 + $0x59c] sm:$0xf]
    %v289 = vld [vmem:[#allocation6 + $0x5a0] sm:$0xff]
    %v290 = vld [vmem:[#allocation6 + $0x5a8] sm:$0xff]
    %v291 = vld [vmem:[#allocation6 + $0x5b0] sm:$0xff]
    %v292 = vld [vmem:[#allocation6 + $0x5b8] sm:$0xff]
    %v293 = vld [vmem:[#allocation6 + $0x5c0] sm:$0xf]
    %v294 = vld [vmem:[#allocation6 + $0x5c4] sm:$0xff]
    %v295 = vld [vmem:[#allocation6 + $0x5cc] sm:$0xff]
    %v296 = vld [vmem:[#allocation6 + $0x5d4] sm:$0xff]
    %v297 = vld [vmem:[#allocation6 + $0x5dc] sm:$0xff]
    %v298 = vld [vmem:[#allocation6 + $0x5e4] sm:$0xf]
    %v299 = vld [vmem:[#allocation6 + $0x5e8] sm:$0xff]
    %v300 = vld [vmem:[#allocation6 + $0x5f0] sm:$0xff]
    %v301 = vld [vmem:[#allocation6 + $0x5f8] sm:$0xff]
    %v302 = vld [vmem:[#allocation6 + $0x600] sm:$0xff]
    %v303 = vld [vmem:[#allocation6 + $0x608] sm:$0xf]
    %v304 = vld [vmem:[#allocation6 + $0x60c] sm:$0xff]
    %v305 = vld [vmem:[#allocation6 + $0x614] sm:$0xff]
    %v306 = vld [vmem:[#allocation6 + $0x61c] sm:$0xff]
    %v307 = vld [vmem:[#allocation6 + $0x624] sm:$0xff]
    %v308 = vld [vmem:[#allocation6 + $0x62c] sm:$0xf]
    %v309 = vld [vmem:[#allocation6 + $0x630] sm:$0xff]
    %v310 = vld [vmem:[#allocation6 + $0x638] sm:$0xff]
    %v311 = vld [vmem:[#allocation6 + $0x640] sm:$0xff]
    %v312 = vld [vmem:[#allocation6 + $0x648] sm:$0xff]
    %v313 = vld [vmem:[#allocation6 + $0x650] sm:$0xf]
    %v314 = vld [vmem:[#allocation6 + $0x654] sm:$0xff]
    %v315 = vld [vmem:[#allocation6 + $0x65c] sm:$0xff]
    %v316 = vld [vmem:[#allocation6 + $0x664] sm:$0xff]
    %v317 = vld [vmem:[#allocation6 + $0x66c] sm:$0xff]
    %v318 = vld [vmem:[#allocation6 + $0x674] sm:$0xf]
    %v319 = vld [vmem:[#allocation6 + $0x678] sm:$0xff]
    %v320 = vld [vmem:[#allocation6 + $0x680] sm:$0xff]
    %v321 = vld [vmem:[#allocation6 + $0x688] sm:$0xff]
    %v322 = vld [vmem:[#allocation6 + $0x690] sm:$0xff]
    %v323 = vld [vmem:[#allocation6 + $0x698] sm:$0xf]
    %v324 = vld [vmem:[#allocation6 + $0x69c] sm:$0xff]
    %v325 = vld [vmem:[#allocation6 + $0x6a4] sm:$0xff]
    %v326 = vld [vmem:[#allocation6 + $0x6ac] sm:$0xff]
    %v327 = vld [vmem:[#allocation6 + $0x6b4] sm:$0xff]
    %v328 = vld [vmem:[#allocation6 + $0x6bc] sm:$0xf]
    %v569 = vunpack.c.l.b16 %v89
    %v570 = vunpack.c.h.b16 %v89
    %v571 = vunpack.c.l.b16 %v90
    %v572 = vunpack.c.h.b16 %v90
    %v573 = vunpack.c.l.b16 %v91
    %v574 = vunpack.c.h.b16 %v91
    %v575 = vunpack.c.l.b16 %v92
    %v576 = vunpack.c.h.b16 %v92
    %v577 = vunpack.c.l.b16 %v93
    %v578 = vunpack.c.l.b16 %v94
    %v579 = vunpack.c.h.b16 %v94
    %v580 = vunpack.c.l.b16 %v95
    %v581 = vunpack.c.h.b16 %v95
    %v582 = vunpack.c.l.b16 %v96
    %v583 = vunpack.c.h.b16 %v96
    %v584 = vunpack.c.l.b16 %v97
    %v585 = vunpack.c.h.b16 %v97
    %v586 = vunpack.c.l.b16 %v98
    %v587 = vunpack.c.l.b16 %v99
    %v588 = vunpack.c.h.b16 %v99
    %v589 = vunpack.c.l.b16 %v100
    %v590 = vunpack.c.h.b16 %v100
    %v591 = vunpack.c.l.b16 %v101
    %v592 = vunpack.c.h.b16 %v101
    %v593 = vunpack.c.l.b16 %v102
    %v594 = vunpack.c.h.b16 %v102
    %v595 = vunpack.c.l.b16 %v103
    %v596 = vunpack.c.l.b16 %v104
    %v597 = vunpack.c.h.b16 %v104
    %v598 = vunpack.c.l.b16 %v105
    %v599 = vunpack.c.h.b16 %v105
    %v600 = vunpack.c.l.b16 %v106
    %v601 = vunpack.c.h.b16 %v106
    %v602 = vunpack.c.l.b16 %v107
    %v603 = vunpack.c.h.b16 %v107
    %v604 = vunpack.c.l.b16 %v108
    %v605 = vunpack.c.l.b16 %v109
    %v606 = vunpack.c.h.b16 %v109
    %v607 = vunpack.c.l.b16 %v110
    %v608 = vunpack.c.h.b16 %v110
    %v609 = vunpack.c.l.b16 %v111
    %v610 = vunpack.c.h.b16 %v111
    %v611 = vunpack.c.l.b16 %v112
    %v612 = vunpack.c.h.b16 %v112
    %v613 = vunpack.c.l.b16 %v113
    %v614 = vunpack.c.l.b16 %v114
    %v615 = vunpack.c.h.b16 %v114
    %v616 = vunpack.c.l.b16 %v115
    %v617 = vunpack.c.h.b16 %v115
    %v618 = vunpack.c.l.b16 %v116
    %v619 = vunpack.c.h.b16 %v116
    %v620 = vunpack.c.l.b16 %v117
    %v621 = vunpack.c.h.b16 %v117
    %v622 = vunpack.c.l.b16 %v118
    %v623 = vunpack.c.l.b16 %v119
    %v624 = vunpack.c.h.b16 %v119
    %v625 = vunpack.c.l.b16 %v120
    %v626 = vunpack.c.h.b16 %v120
    %v627 = vunpack.c.l.b16 %v121
    %v628 = vunpack.c.h.b16 %v121
    %v629 = vunpack.c.l.b16 %v122
    %v630 = vunpack.c.h.b16 %v122
    %v631 = vunpack.c.l.b16 %v123
    %v632 = vunpack.c.l.b16 %v124
    %v633 = vunpack.c.h.b16 %v124
    %v634 = vunpack.c.l.b16 %v125
    %v635 = vunpack.c.h.b16 %v125
    %v636 = vunpack.c.l.b16 %v126
    %v637 = vunpack.c.h.b16 %v126
    %v638 = vunpack.c.l.b16 %v127
    %v639 = vunpack.c.h.b16 %v127
    %v640 = vunpack.c.l.b16 %v128
    %v641 = vunpack.c.l.b16 %v129
    %v642 = vunpack.c.h.b16 %v129
    %v643 = vunpack.c.l.b16 %v130
    %v644 = vunpack.c.h.b16 %v130
    %v645 = vunpack.c.l.b16 %v131
    %v646 = vunpack.c.h.b16 %v131
    %v647 = vunpack.c.l.b16 %v132
    %v648 = vunpack.c.h.b16 %v132
    %v649 = vunpack.c.l.b16 %v133
    %v650 = vunpack.c.l.b16 %v134
    %v651 = vunpack.c.h.b16 %v134
    %v652 = vunpack.c.l.b16 %v135
    %v653 = vunpack.c.h.b16 %v135
    %v654 = vunpack.c.l.b16 %v136
    %v655 = vunpack.c.h.b16 %v136
    %v656 = vunpack.c.l.b16 %v137
    %v657 = vunpack.c.h.b16 %v137
    %v658 = vunpack.c.l.b16 %v138
    %v659 = vunpack.c.l.b16 %v139
    %v660 = vunpack.c.h.b16 %v139
    %v661 = vunpack.c.l.b16 %v140
    %v662 = vunpack.c.h.b16 %v140
    %v663 = vunpack.c.l.b16 %v141
    %v664 = vunpack.c.h.b16 %v141
    %v665 = vunpack.c.l.b16 %v142
    %v666 = vunpack.c.h.b16 %v142
    %v667 = vunpack.c.l.b16 %v143
    %v668 = vunpack.c.l.b16 %v144
    %v669 = vunpack.c.h.b16 %v144
    %v670 = vunpack.c.l.b16 %v145
    %v671 = vunpack.c.h.b16 %v145
    %v672 = vunpack.c.l.b16 %v146
    %v673 = vunpack.c.h.b16 %v146
    %v674 = vunpack.c.l.b16 %v147
    %v675 = vunpack.c.h.b16 %v147
    %v676 = vunpack.c.l.b16 %v148
    %v677 = vunpack.c.l.b16 %v149
    %v678 = vunpack.c.h.b16 %v149
    %v679 = vunpack.c.l.b16 %v150
    %v680 = vunpack.c.h.b16 %v150
    %v681 = vunpack.c.l.b16 %v151
    %v682 = vunpack.c.h.b16 %v151
    %v683 = vunpack.c.l.b16 %v152
    %v684 = vunpack.c.h.b16 %v152
    %v685 = vunpack.c.l.b16 %v153
    %v686 = vunpack.c.l.b16 %v154
    %v687 = vunpack.c.h.b16 %v154
    %v688 = vunpack.c.l.b16 %v155
    %v689 = vunpack.c.h.b16 %v155
    %v690 = vunpack.c.l.b16 %v156
    %v691 = vunpack.c.h.b16 %v156
    %v692 = vunpack.c.l.b16 %v157
    %v693 = vunpack.c.h.b16 %v157
    %v694 = vunpack.c.l.b16 %v158
    %v695 = vunpack.c.l.b16 %v159
    %v696 = vunpack.c.h.b16 %v159
    %v697 = vunpack.c.l.b16 %v160
    %v698 = vunpack.c.h.b16 %v160
    %v699 = vunpack.c.l.b16 %v161
    %v700 = vunpack.c.h.b16 %v161
    %v701 = vunpack.c.l.b16 %v162
    %v702 = vunpack.c.h.b16 %v162
    %v703 = vunpack.c.l.b16 %v163
    %v704 = vunpack.c.l.b16 %v164
    %v705 = vunpack.c.h.b16 %v164
    %v706 = vunpack.c.l.b16 %v165
    %v707 = vunpack.c.h.b16 %v165
    %v708 = vunpack.c.l.b16 %v166
    %v709 = vunpack.c.h.b16 %v166
    %v710 = vunpack.c.l.b16 %v167
    %v711 = vunpack.c.h.b16 %v167
    %v712 = vunpack.c.l.b16 %v168
    %v713 = vunpack.c.l.b16 %v169
    %v714 = vunpack.c.h.b16 %v169
    %v715 = vunpack.c.l.b16 %v170
    %v716 = vunpack.c.h.b16 %v170
    %v717 = vunpack.c.l.b16 %v171
    %v718 = vunpack.c.h.b16 %v171
    %v719 = vunpack.c.l.b16 %v172
    %v720 = vunpack.c.h.b16 %v172
    %v721 = vunpack.c.l.b16 %v173
    %v722 = vunpack.c.l.b16 %v174
    %v723 = vunpack.c.h.b16 %v174
    %v724 = vunpack.c.l.b16 %v175
    %v725 = vunpack.c.h.b16 %v175
    %v726 = vunpack.c.l.b16 %v176
    %v727 = vunpack.c.h.b16 %v176
    %v728 = vunpack.c.l.b16 %v177
    %v729 = vunpack.c.h.b16 %v177
    %v730 = vunpack.c.l.b16 %v178
    %v731 = vunpack.c.l.b16 %v179
    %v732 = vunpack.c.h.b16 %v179
    %v733 = vunpack.c.l.b16 %v180
    %v734 = vunpack.c.h.b16 %v180
    %v735 = vunpack.c.l.b16 %v181
    %v736 = vunpack.c.h.b16 %v181
    %v737 = vunpack.c.l.b16 %v182
    %v738 = vunpack.c.h.b16 %v182
    %v739 = vunpack.c.l.b16 %v183
    %v740 = vunpack.c.l.b16 %v184
    %v741 = vunpack.c.h.b16 %v184
    %v742 = vunpack.c.l.b16 %v185
    %v743 = vunpack.c.h.b16 %v185
    %v744 = vunpack.c.l.b16 %v186
    %v745 = vunpack.c.h.b16 %v186
    %v746 = vunpack.c.l.b16 %v187
    %v747 = vunpack.c.h.b16 %v187
    %v748 = vunpack.c.l.b16 %v188
    %v749 = vunpack.c.l.b16 %v189
    %v750 = vunpack.c.h.b16 %v189
    %v751 = vunpack.c.l.b16 %v190
    %v752 = vunpack.c.h.b16 %v190
    %v753 = vunpack.c.l.b16 %v191
    %v754 = vunpack.c.h.b16 %v191
    %v755 = vunpack.c.l.b16 %v192
    %v756 = vunpack.c.h.b16 %v192
    %v757 = vunpack.c.l.b16 %v193
    %v758 = vunpack.c.l.b16 %v194
    %v759 = vunpack.c.h.b16 %v194
    %v760 = vunpack.c.l.b16 %v195
    %v761 = vunpack.c.h.b16 %v195
    %v762 = vunpack.c.l.b16 %v196
    %v763 = vunpack.c.h.b16 %v196
    %v764 = vunpack.c.l.b16 %v197
    %v765 = vunpack.c.h.b16 %v197
    %v766 = vunpack.c.l.b16 %v198
    %v767 = vunpack.c.l.b16 %v199
    %v768 = vunpack.c.h.b16 %v199
    %v769 = vunpack.c.l.b16 %v200
    %v770 = vunpack.c.h.b16 %v200
    %v771 = vunpack.c.l.b16 %v201
    %v772 = vunpack.c.h.b16 %v201
    %v773 = vunpack.c.l.b16 %v202
    %v774 = vunpack.c.h.b16 %v202
    %v775 = vunpack.c.l.b16 %v203
    %v776 = vunpack.c.l.b16 %v204
    %v777 = vunpack.c.h.b16 %v204
    %v778 = vunpack.c.l.b16 %v205
    %v779 = vunpack.c.h.b16 %v205
    %v780 = vunpack.c.l.b16 %v206
    %v781 = vunpack.c.h.b16 %v206
    %v782 = vunpack.c.l.b16 %v207
    %v783 = vunpack.c.h.b16 %v207
    %v784 = vunpack.c.l.b16 %v208
    %v785 = vunpack.c.l.b16 %v209
    %v786 = vunpack.c.h.b16 %v209
    %v787 = vunpack.c.l.b16 %v210
    %v788 = vunpack.c.h.b16 %v210
    %v789 = vunpack.c.l.b16 %v211
    %v790 = vunpack.c.h.b16 %v211
    %v791 = vunpack.c.l.b16 %v212
    %v792 = vunpack.c.h.b16 %v212
    %v793 = vunpack.c.l.b16 %v213
    %v794 = vunpack.c.l.b16 %v214
    %v795 = vunpack.c.h.b16 %v214
    %v796 = vunpack.c.l.b16 %v215
    %v797 = vunpack.c.h.b16 %v215
    %v798 = vunpack.c.l.b16 %v216
    %v799 = vunpack.c.h.b16 %v216
    %v800 = vunpack.c.l.b16 %v217
    %v801 = vunpack.c.h.b16 %v217
    %v802 = vunpack.c.l.b16 %v218
    %v803 = vunpack.c.l.b16 %v219
    %v804 = vunpack.c.h.b16 %v219
    %v805 = vunpack.c.l.b16 %v220
    %v806 = vunpack.c.h.b16 %v220
    %v807 = vunpack.c.l.b16 %v221
    %v808 = vunpack.c.h.b16 %v221
    %v809 = vunpack.c.l.b16 %v222
    %v810 = vunpack.c.h.b16 %v222
    %v811 = vunpack.c.l.b16 %v223
    %v812 = vunpack.c.l.b16 %v224
    %v813 = vunpack.c.h.b16 %v224
    %v814 = vunpack.c.l.b16 %v225
    %v815 = vunpack.c.h.b16 %v225
    %v816 = vunpack.c.l.b16 %v226
    %v817 = vunpack.c.h.b16 %v226
    %v818 = vunpack.c.l.b16 %v227
    %v819 = vunpack.c.h.b16 %v227
    %v820 = vunpack.c.l.b16 %v228
    %v821 = vunpack.c.l.b16 %v229
    %v822 = vunpack.c.h.b16 %v229
    %v823 = vunpack.c.l.b16 %v230
    %v824 = vunpack.c.h.b16 %v230
    %v825 = vunpack.c.l.b16 %v231
    %v826 = vunpack.c.h.b16 %v231
    %v827 = vunpack.c.l.b16 %v232
    %v828 = vunpack.c.h.b16 %v232
    %v829 = vunpack.c.l.b16 %v233
    %v830 = vunpack.c.l.b16 %v234
    %v831 = vunpack.c.h.b16 %v234
    %v832 = vunpack.c.l.b16 %v235
    %v833 = vunpack.c.h.b16 %v235
    %v834 = vunpack.c.l.b16 %v236
    %v835 = vunpack.c.h.b16 %v236
    %v836 = vunpack.c.l.b16 %v237
    %v837 = vunpack.c.h.b16 %v237
    %v838 = vunpack.c.l.b16 %v238
    %v839 = vunpack.c.l.b16 %v239
    %v840 = vunpack.c.h.b16 %v239
    %v841 = vunpack.c.l.b16 %v240
    %v842 = vunpack.c.h.b16 %v240
    %v843 = vunpack.c.l.b16 %v241
    %v844 = vunpack.c.h.b16 %v241
    %v845 = vunpack.c.l.b16 %v242
    %v846 = vunpack.c.h.b16 %v242
    %v847 = vunpack.c.l.b16 %v243
    %v848 = vunpack.c.l.b16 %v244
    %v849 = vunpack.c.h.b16 %v244
    %v850 = vunpack.c.l.b16 %v245
    %v851 = vunpack.c.h.b16 %v245
    %v852 = vunpack.c.l.b16 %v246
    %v853 = vunpack.c.h.b16 %v246
    %v854 = vunpack.c.l.b16 %v247
    %v855 = vunpack.c.h.b16 %v247
    %v856 = vunpack.c.l.b16 %v248
    %v857 = vunpack.c.l.b16 %v249
    %v858 = vunpack.c.h.b16 %v249
    %v859 = vunpack.c.l.b16 %v250
    %v860 = vunpack.c.h.b16 %v250
    %v861 = vunpack.c.l.b16 %v251
    %v862 = vunpack.c.h.b16 %v251
    %v863 = vunpack.c.l.b16 %v252
    %v864 = vunpack.c.h.b16 %v252
    %v865 = vunpack.c.l.b16 %v253
    %v866 = vunpack.c.l.b16 %v254
    %v867 = vunpack.c.h.b16 %v254
    %v868 = vunpack.c.l.b16 %v255
    %v869 = vunpack.c.h.b16 %v255
    %v870 = vunpack.c.l.b16 %v256
    %v871 = vunpack.c.h.b16 %v256
    %v872 = vunpack.c.l.b16 %v257
    %v873 = vunpack.c.h.b16 %v257
    %v874 = vunpack.c.l.b16 %v258
    %v875 = vunpack.c.l.b16 %v259
    %v876 = vunpack.c.h.b16 %v259
    %v877 = vunpack.c.l.b16 %v260
    %v878 = vunpack.c.h.b16 %v260
    %v879 = vunpack.c.l.b16 %v261
    %v880 = vunpack.c.h.b16 %v261
    %v881 = vunpack.c.l.b16 %v262
    %v882 = vunpack.c.h.b16 %v262
    %v883 = vunpack.c.l.b16 %v263
    %v884 = vunpack.c.l.b16 %v264
    %v885 = vunpack.c.h.b16 %v264
    %v886 = vunpack.c.l.b16 %v265
    %v887 = vunpack.c.h.b16 %v265
    %v888 = vunpack.c.l.b16 %v266
    %v889 = vunpack.c.h.b16 %v266
    %v890 = vunpack.c.l.b16 %v267
    %v891 = vunpack.c.h.b16 %v267
    %v892 = vunpack.c.l.b16 %v268
    %v893 = vunpack.c.l.b16 %v269
    %v894 = vunpack.c.h.b16 %v269
    %v895 = vunpack.c.l.b16 %v270
    %v896 = vunpack.c.h.b16 %v270
    %v897 = vunpack.c.l.b16 %v271
    %v898 = vunpack.c.h.b16 %v271
    %v899 = vunpack.c.l.b16 %v272
    %v900 = vunpack.c.h.b16 %v272
    %v901 = vunpack.c.l.b16 %v273
    %v902 = vunpack.c.l.b16 %v274
    %v903 = vunpack.c.h.b16 %v274
    %v904 = vunpack.c.l.b16 %v275
    %v905 = vunpack.c.h.b16 %v275
    %v906 = vunpack.c.l.b16 %v276
    %v907 = vunpack.c.h.b16 %v276
    %v908 = vunpack.c.l.b16 %v277
    %v909 = vunpack.c.h.b16 %v277
    %v910 = vunpack.c.l.b16 %v278
    %v911 = vunpack.c.l.b16 %v279
    %v912 = vunpack.c.h.b16 %v279
    %v913 = vunpack.c.l.b16 %v280
    %v914 = vunpack.c.h.b16 %v280
    %v915 = vunpack.c.l.b16 %v281
    %v916 = vunpack.c.h.b16 %v281
    %v917 = vunpack.c.l.b16 %v282
    %v918 = vunpack.c.h.b16 %v282
    %v919 = vunpack.c.l.b16 %v283
    %v920 = vunpack.c.l.b16 %v284
    %v921 = vunpack.c.h.b16 %v284
    %v922 = vunpack.c.l.b16 %v285
    %v923 = vunpack.c.h.b16 %v285
    %v924 = vunpack.c.l.b16 %v286
    %v925 = vunpack.c.h.b16 %v286
    %v926 = vunpack.c.l.b16 %v287
    %v927 = vunpack.c.h.b16 %v287
    %v928 = vunpack.c.l.b16 %v288
    %v929 = vunpack.c.l.b16 %v289
    %v930 = vunpack.c.h.b16 %v289
    %v931 = vunpack.c.l.b16 %v290
    %v932 = vunpack.c.h.b16 %v290
    %v933 = vunpack.c.l.b16 %v291
    %v934 = vunpack.c.h.b16 %v291
    %v935 = vunpack.c.l.b16 %v292
    %v936 = vunpack.c.h.b16 %v292
    %v937 = vunpack.c.l.b16 %v293
    %v938 = vunpack.c.l.b16 %v294
    %v939 = vunpack.c.h.b16 %v294
    %v940 = vunpack.c.l.b16 %v295
    %v941 = vunpack.c.h.b16 %v295
    %v942 = vunpack.c.l.b16 %v296
    %v943 = vunpack.c.h.b16 %v296
    %v944 = vunpack.c.l.b16 %v297
    %v945 = vunpack.c.h.b16 %v297
    %v946 = vunpack.c.l.b16 %v298
    %v947 = vunpack.c.l.b16 %v299
    %v948 = vunpack.c.h.b16 %v299
    %v949 = vunpack.c.l.b16 %v300
    %v950 = vunpack.c.h.b16 %v300
    %v951 = vunpack.c.l.b16 %v301
    %v952 = vunpack.c.h.b16 %v301
    %v953 = vunpack.c.l.b16 %v302
    %v954 = vunpack.c.h.b16 %v302
    %v955 = vunpack.c.l.b16 %v303
    %v956 = vunpack.c.l.b16 %v304
    %v957 = vunpack.c.h.b16 %v304
    %v958 = vunpack.c.l.b16 %v305
    %v959 = vunpack.c.h.b16 %v305
    %v960 = vunpack.c.l.b16 %v306
    %v961 = vunpack.c.h.b16 %v306
    %v962 = vunpack.c.l.b16 %v307
    %v963 = vunpack.c.h.b16 %v307
    %v964 = vunpack.c.l.b16 %v308
    %v965 = vunpack.c.l.b16 %v309
    %v966 = vunpack.c.h.b16 %v309
    %v967 = vunpack.c.l.b16 %v310
    %v968 = vunpack.c.h.b16 %v310
    %v969 = vunpack.c.l.b16 %v311
    %v970 = vunpack.c.h.b16 %v311
    %v971 = vunpack.c.l.b16 %v312
    %v972 = vunpack.c.h.b16 %v312
    %v973 = vunpack.c.l.b16 %v313
    %v974 = vunpack.c.l.b16 %v314
    %v975 = vunpack.c.h.b16 %v314
    %v976 = vunpack.c.l.b16 %v315
    %v977 = vunpack.c.h.b16 %v315
    %v978 = vunpack.c.l.b16 %v316
    %v979 = vunpack.c.h.b16 %v316
    %v980 = vunpack.c.l.b16 %v317
    %v981 = vunpack.c.h.b16 %v317
    %v982 = vunpack.c.l.b16 %v318
    %v983 = vunpack.c.l.b16 %v319
    %v984 = vunpack.c.h.b16 %v319
    %v985 = vunpack.c.l.b16 %v320
    %v986 = vunpack.c.h.b16 %v320
    %v987 = vunpack.c.l.b16 %v321
    %v988 = vunpack.c.h.b16 %v321
    %v989 = vunpack.c.l.b16 %v322
    %v990 = vunpack.c.h.b16 %v322
    %v991 = vunpack.c.l.b16 %v323
    %v992 = vunpack.c.l.b16 %v324
    %v993 = vunpack.c.h.b16 %v324
    %v994 = vunpack.c.l.b16 %v325
    %v995 = vunpack.c.h.b16 %v325
    %v996 = vunpack.c.l.b16 %v326
    %v997 = vunpack.c.h.b16 %v326
    %v998 = vunpack.c.l.b16 %v327
    %v999 = vunpack.c.h.b16 %v327
    %v1000 = vunpack.c.l.b16 %v328
    %v1001 = vpack.c.b16 %v578, %v569
    %v1002 = vpack.c.b16 %v579, %v570
    %v1003 = vpack.c.b16 %v580, %v571
    %v1004 = vpack.c.b16 %v581, %v572
    %v1005 = vpack.c.b16 %v582, %v573
    %v1006 = vpack.c.b16 %v583, %v574
    %v1007 = vpack.c.b16 %v584, %v575
    %v1008 = vpack.c.b16 %v585, %v576
    %v1009 = vpack.c.b16 %v586, %v577
    %v1010 = vpack.c.b16 %v596, %v587
    %v1011 = vpack.c.b16 %v597, %v588
    %v1012 = vpack.c.b16 %v598, %v589
    %v1013 = vpack.c.b16 %v599, %v590
    %v1014 = vpack.c.b16 %v600, %v591
    %v1015 = vpack.c.b16 %v601, %v592
    %v1016 = vpack.c.b16 %v602, %v593
    %v1017 = vpack.c.b16 %v603, %v594
    %v1018 = vpack.c.b16 %v604, %v595
    %v1019 = vpack.c.b16 %v614, %v605
    %v1020 = vpack.c.b16 %v615, %v606
    %v1021 = vpack.c.b16 %v616, %v607
    %v1022 = vpack.c.b16 %v617, %v608
    %v1023 = vpack.c.b16 %v618, %v609
    %v1024 = vpack.c.b16 %v619, %v610
    %v1025 = vpack.c.b16 %v620, %v611
    %v1026 = vpack.c.b16 %v621, %v612
    %v1027 = vpack.c.b16 %v622, %v613
    %v1028 = vpack.c.b16 %v632, %v623
    %v1029 = vpack.c.b16 %v633, %v624
    %v1030 = vpack.c.b16 %v634, %v625
    %v1031 = vpack.c.b16 %v635, %v626
    %v1032 = vpack.c.b16 %v636, %v627
    %v1033 = vpack.c.b16 %v637, %v628
    %v1034 = vpack.c.b16 %v638, %v629
    %v1035 = vpack.c.b16 %v639, %v630
    %v1036 = vpack.c.b16 %v640, %v631
    %v1037 = vpack.c.b16 %v650, %v641
    %v1038 = vpack.c.b16 %v651, %v642
    %v1039 = vpack.c.b16 %v652, %v643
    %v1040 = vpack.c.b16 %v653, %v644
    %v1041 = vpack.c.b16 %v654, %v645
    %v1042 = vpack.c.b16 %v655, %v646
    %v1043 = vpack.c.b16 %v656, %v647
    %v1044 = vpack.c.b16 %v657, %v648
    %v1045 = vpack.c.b16 %v658, %v649
    %v1046 = vpack.c.b16 %v668, %v659
    %v1047 = vpack.c.b16 %v669, %v660
    %v1048 = vpack.c.b16 %v670, %v661
    %v1049 = vpack.c.b16 %v671, %v662
    %v1050 = vpack.c.b16 %v672, %v663
    %v1051 = vpack.c.b16 %v673, %v664
    %v1052 = vpack.c.b16 %v674, %v665
    %v1053 = vpack.c.b16 %v675, %v666
    %v1054 = vpack.c.b16 %v676, %v667
    %v1055 = vpack.c.b16 %v686, %v677
    %v1056 = vpack.c.b16 %v687, %v678
    %v1057 = vpack.c.b16 %v688, %v679
    %v1058 = vpack.c.b16 %v689, %v680
    %v1059 = vpack.c.b16 %v690, %v681
    %v1060 = vpack.c.b16 %v691, %v682
    %v1061 = vpack.c.b16 %v692, %v683
    %v1062 = vpack.c.b16 %v693, %v684
    %v1063 = vpack.c.b16 %v694, %v685
    %v1064 = vpack.c.b16 %v704, %v695
    %v1065 = vpack.c.b16 %v705, %v696
    %v1066 = vpack.c.b16 %v706, %v697
    %v1067 = vpack.c.b16 %v707, %v698
    %v1068 = vpack.c.b16 %v708, %v699
    %v1069 = vpack.c.b16 %v709, %v700
    %v1070 = vpack.c.b16 %v710, %v701
    %v1071 = vpack.c.b16 %v711, %v702
    %v1072 = vpack.c.b16 %v712, %v703
    %v1073 = vpack.c.b16 %v722, %v713
    %v1074 = vpack.c.b16 %v723, %v714
    %v1075 = vpack.c.b16 %v724, %v715
    %v1076 = vpack.c.b16 %v725, %v716
    %v1077 = vpack.c.b16 %v726, %v717
    %v1078 = vpack.c.b16 %v727, %v718
    %v1079 = vpack.c.b16 %v728, %v719
    %v1080 = vpack.c.b16 %v729, %v720
    %v1081 = vpack.c.b16 %v730, %v721
    %v1082 = vpack.c.b16 %v740, %v731
    %v1083 = vpack.c.b16 %v741, %v732
    %v1084 = vpack.c.b16 %v742, %v733
    %v1085 = vpack.c.b16 %v743, %v734
    %v1086 = vpack.c.b16 %v744, %v735
    %v1087 = vpack.c.b16 %v745, %v736
    %v1088 = vpack.c.b16 %v746, %v737
    %v1089 = vpack.c.b16 %v747, %v738
    %v1090 = vpack.c.b16 %v748, %v739
    %v1091 = vpack.c.b16 %v758, %v749
    %v1092 = vpack.c.b16 %v759, %v750
    %v1093 = vpack.c.b16 %v760, %v751
    %v1094 = vpack.c.b16 %v761, %v752
    %v1095 = vpack.c.b16 %v762, %v753
    %v1096 = vpack.c.b16 %v763, %v754
    %v1097 = vpack.c.b16 %v764, %v755
    %v1098 = vpack.c.b16 %v765, %v756
    %v1099 = vpack.c.b16 %v766, %v757
    %v1100 = vpack.c.b16 %v776, %v767
    %v1101 = vpack.c.b16 %v777, %v768
    %v1102 = vpack.c.b16 %v778, %v769
    %v1103 = vpack.c.b16 %v779, %v770
    %v1104 = vpack.c.b16 %v780, %v771
    %v1105 = vpack.c.b16 %v781, %v772
    %v1106 = vpack.c.b16 %v782, %v773
    %v1107 = vpack.c.b16 %v783, %v774
    %v1108 = vpack.c.b16 %v784, %v775
    %v1109 = vpack.c.b16 %v794, %v785
    %v1110 = vpack.c.b16 %v795, %v786
    %v1111 = vpack.c.b16 %v796, %v787
    %v1112 = vpack.c.b16 %v797, %v788
    %v1113 = vpack.c.b16 %v798, %v789
    %v1114 = vpack.c.b16 %v799, %v790
    %v1115 = vpack.c.b16 %v800, %v791
    %v1116 = vpack.c.b16 %v801, %v792
    %v1117 = vpack.c.b16 %v802, %v793
    %v1118 = vpack.c.b16 %v812, %v803
    %v1119 = vpack.c.b16 %v813, %v804
    %v1120 = vpack.c.b16 %v814, %v805
    %v1121 = vpack.c.b16 %v815, %v806
    %v1122 = vpack.c.b16 %v816, %v807
    %v1123 = vpack.c.b16 %v817, %v808
    %v1124 = vpack.c.b16 %v818, %v809
    %v1125 = vpack.c.b16 %v819, %v810
    %v1126 = vpack.c.b16 %v820, %v811
    %v1127 = vpack.c.b16 %v830, %v821
    %v1128 = vpack.c.b16 %v831, %v822
    %v1129 = vpack.c.b16 %v832, %v823
    %v1130 = vpack.c.b16 %v833, %v824
    %v1131 = vpack.c.b16 %v834, %v825
    %v1132 = vpack.c.b16 %v835, %v826
    %v1133 = vpack.c.b16 %v836, %v827
    %v1134 = vpack.c.b16 %v837, %v828
    %v1135 = vpack.c.b16 %v838, %v829
    %v1136 = vpack.c.b16 %v848, %v839
    %v1137 = vpack.c.b16 %v849, %v840
    %v1138 = vpack.c.b16 %v850, %v841
    %v1139 = vpack.c.b16 %v851, %v842
    %v1140 = vpack.c.b16 %v852, %v843
    %v1141 = vpack.c.b16 %v853, %v844
    %v1142 = vpack.c.b16 %v854, %v845
    %v1143 = vpack.c.b16 %v855, %v846
    %v1144 = vpack.c.b16 %v856, %v847
    %v1145 = vpack.c.b16 %v866, %v857
    %v1146 = vpack.c.b16 %v867, %v858
    %v1147 = vpack.c.b16 %v868, %v859
    %v1148 = vpack.c.b16 %v869, %v860
    %v1149 = vpack.c.b16 %v870, %v861
    %v1150 = vpack.c.b16 %v871, %v862
    %v1151 = vpack.c.b16 %v872, %v863
    %v1152 = vpack.c.b16 %v873, %v864
    %v1153 = vpack.c.b16 %v874, %v865
    %v1154 = vpack.c.b16 %v884, %v875
    %v1155 = vpack.c.b16 %v885, %v876
    %v1156 = vpack.c.b16 %v886, %v877
    %v1157 = vpack.c.b16 %v887, %v878
    %v1158 = vpack.c.b16 %v888, %v879
    %v1159 = vpack.c.b16 %v889, %v880
    %v1160 = vpack.c.b16 %v890, %v881
    %v1161 = vpack.c.b16 %v891, %v882
    %v1162 = vpack.c.b16 %v892, %v883
    %v1163 = vpack.c.b16 %v902, %v893
    %v1164 = vpack.c.b16 %v903, %v894
    %v1165 = vpack.c.b16 %v904, %v895
    %v1166 = vpack.c.b16 %v905, %v896
    %v1167 = vpack.c.b16 %v906, %v897
    %v1168 = vpack.c.b16 %v907, %v898
    %v1169 = vpack.c.b16 %v908, %v899
    %v1170 = vpack.c.b16 %v909, %v900
    %v1171 = vpack.c.b16 %v910, %v901
    %v1172 = vpack.c.b16 %v920, %v911
    %v1173 = vpack.c.b16 %v921, %v912
    %v1174 = vpack.c.b16 %v922, %v913
    %v1175 = vpack.c.b16 %v923, %v914
    %v1176 = vpack.c.b16 %v924, %v915
    %v1177 = vpack.c.b16 %v925, %v916
    %v1178 = vpack.c.b16 %v926, %v917
    %v1179 = vpack.c.b16 %v927, %v918
    %v1180 = vpack.c.b16 %v928, %v919
    %v1181 = vpack.c.b16 %v938, %v929
    %v1182 = vpack.c.b16 %v939, %v930
    %v1183 = vpack.c.b16 %v940, %v931
    %v1184 = vpack.c.b16 %v941, %v932
    %v1185 = vpack.c.b16 %v942, %v933
    %v1186 = vpack.c.b16 %v943, %v934
    %v1187 = vpack.c.b16 %v944, %v935
    %v1188 = vpack.c.b16 %v945, %v936
    %v1189 = vpack.c.b16 %v946, %v937
    %v1190 = vpack.c.b16 %v956, %v947
    %v1191 = vpack.c.b16 %v957, %v948
    %v1192 = vpack.c.b16 %v958, %v949
    %v1193 = vpack.c.b16 %v959, %v950
    %v1194 = vpack.c.b16 %v960, %v951
    %v1195 = vpack.c.b16 %v961, %v952
    %v1196 = vpack.c.b16 %v962, %v953
    %v1197 = vpack.c.b16 %v963, %v954
    %v1198 = vpack.c.b16 %v964, %v955
    %v1199 = vpack.c.b16 %v974, %v965
    %v1200 = vpack.c.b16 %v975, %v966
    %v1201 = vpack.c.b16 %v976, %v967
    %v1202 = vpack.c.b16 %v977, %v968
    %v1203 = vpack.c.b16 %v978, %v969
    %v1204 = vpack.c.b16 %v979, %v970
    %v1205 = vpack.c.b16 %v980, %v971
    %v1206 = vpack.c.b16 %v981, %v972
    %v1207 = vpack.c.b16 %v982, %v973
    %v1208 = vpack.c.b16 %v992, %v983
    %v1209 = vpack.c.b16 %v993, %v984
    %v1210 = vpack.c.b16 %v994, %v985
    %v1211 = vpack.c.b16 %v995, %v986
    %v1212 = vpack.c.b16 %v996, %v987
    %v1213 = vpack.c.b16 %v997, %v988
    %v1214 = vpack.c.b16 %v998, %v989
    %v1215 = vpack.c.b16 %v999, %v990
    %v1216 = vpack.c.b16 %v1000, %v991
    %1433 = vmatpush.bf16.msra.mxu0 %v1064
    %1434 = vmatpush.bf16.msra.mxu0 %v1055
    %1435 = vmatpush.bf16.msra.mxu0 %v1046
    %1436 = vmatpush.bf16.msra.mxu0 %v1037
    %1437 = vmatpush.bf16.msra.mxu0 %v1028
    %1438 = vmatpush.bf16.msra.mxu0 %v1019
    %1439 = vmatpush.bf16.msra.mxu0 %v1010
    %1440 = vmatpush.bf16.msra.mxu0 %v1001
    %1441 = vmatmul.bf16.gmra.mxu0 %v86
    %v1442 = vpop.f32.mrf.mxu0
    %v1443 = vadd.f32 0.0, %v1442
    %v1444 = vpop.f32.mrf.mxu0
    %v1445 = vadd.f32 0.0, %v1444
    %1446 = vdwg.mxu0
    %1447 = vmatpush.bf16.msra.mxu0 %v1136
    %1448 = vmatpush.bf16.msra.mxu0 %v1127
    %1449 = vmatpush.bf16.msra.mxu0 %v1118
    %1450 = vmatpush.bf16.msra.mxu0 %v1109
    %1451 = vmatpush.bf16.msra.mxu0 %v1100
    %1452 = vmatpush.bf16.msra.mxu0 %v1091
    %1453 = vmatpush.bf16.msra.mxu0 %v1082
    %1454 = vmatpush.bf16.msra.mxu0 %v1073
    %1455 = vmatmul.bf16.gmra.mxu0 %v87
    %v1456 = vpop.f32.mrf.mxu0
    %v1457 = vadd.f32 %v1443, %v1456
    %v1458 = vpop.f32.mrf.mxu0
    %v1459 = vadd.f32 %v1445, %v1458
    %1460 = vdwg.mxu0
    %1461 = vmatpush.bf16.msra.mxu0 %v1208
    %1462 = vmatpush.bf16.msra.mxu0 %v1199
    %1463 = vmatpush.bf16.msra.mxu0 %v1190
    %1464 = vmatpush.bf16.msra.mxu0 %v1181
    %1465 = vmatpush.bf16.msra.mxu0 %v1172
    %1466 = vmatpush.bf16.msra.mxu0 %v1163
    %1467 = vmatpush.bf16.msra.mxu0 %v1154
    %1468 = vmatpush.bf16.msra.mxu0 %v1145
    %1469 = vmatmul.bf16.gmra.mxu0 %v88
    %v1470 = vpop.f32.mrf.mxu0
    %v1471 = vadd.f32 %v1457, %v1470
    %v1472 = vpop.f32.mrf.mxu0
    %v1473 = vadd.f32 %v1459, %v1472
    %1474 = vdwg.mxu0
    %1475 = vmatpush.bf16.msra.mxu0 %v1065
    %1476 = vmatpush.bf16.msra.mxu0 %v1056
    %1477 = vmatpush.bf16.msra.mxu0 %v1047
    %1478 = vmatpush.bf16.msra.mxu0 %v1038
    %1479 = vmatpush.bf16.msra.mxu0 %v1029
    %1480 = vmatpush.bf16.msra.mxu0 %v1020
    %1481 = vmatpush.bf16.msra.mxu0 %v1011
    %1482 = vmatpush.bf16.msra.mxu0 %v1002
    %1483 = vmatmul.bf16.gmra.mxu0 %v86
    %v1484 = vpop.f32.mrf.mxu0
    %v1485 = vadd.f32 0.0, %v1484
    %v1486 = vpop.f32.mrf.mxu0
    %v1487 = vadd.f32 0.0, %v1486
    %1488 = vdwg.mxu0
    %1489 = vmatpush.bf16.msra.mxu0 %v1137
    %1490 = vmatpush.bf16.msra.mxu0 %v1128
    %1491 = vmatpush.bf16.msra.mxu0 %v1119
    %1492 = vmatpush.bf16.msra.mxu0 %v1110
    %1493 = vmatpush.bf16.msra.mxu0 %v1101
    %1494 = vmatpush.bf16.msra.mxu0 %v1092
    %1495 = vmatpush.bf16.msra.mxu0 %v1083
    %1496 = vmatpush.bf16.msra.mxu0 %v1074
    %1497 = vmatmul.bf16.gmra.mxu0 %v87
    %v1498 = vpop.f32.mrf.mxu0
    %v1499 = vadd.f32 %v1485, %v1498
    %v1500 = vpop.f32.mrf.mxu0
    %v1501 = vadd.f32 %v1487, %v1500
    %1502 = vdwg.mxu0
    %1503 = vmatpush.bf16.msra.mxu0 %v1209
    %1504 = vmatpush.bf16.msra.mxu0 %v1200
    %1505 = vmatpush.bf16.msra.mxu0 %v1191
    %1506 = vmatpush.bf16.msra.mxu0 %v1182
    %1507 = vmatpush.bf16.msra.mxu0 %v1173
    %1508 = vmatpush.bf16.msra.mxu0 %v1164
    %1509 = vmatpush.bf16.msra.mxu0 %v1155
    %1510 = vmatpush.bf16.msra.mxu0 %v1146
    %1511 = vmatmul.bf16.gmra.mxu0 %v88
    %v1512 = vpop.f32.mrf.mxu0
    %v1513 = vadd.f32 %v1499, %v1512
    %v1514 = vpop.f32.mrf.mxu0
    %v1515 = vadd.f32 %v1501, %v1514
    %1516 = vdwg.mxu0
    %1517 = vmatpush.bf16.msra.mxu0 %v1066
    %1518 = vmatpush.bf16.msra.mxu0 %v1057
    %1519 = vmatpush.bf16.msra.mxu0 %v1048
    %1520 = vmatpush.bf16.msra.mxu0 %v1039
    %1521 = vmatpush.bf16.msra.mxu0 %v1030
    %1522 = vmatpush.bf16.msra.mxu0 %v1021
    %1523 = vmatpush.bf16.msra.mxu0 %v1012
    %1524 = vmatpush.bf16.msra.mxu0 %v1003
    %1525 = vmatmul.bf16.gmra.mxu0 %v86
    %v1526 = vpop.f32.mrf.mxu0
    %v1527 = vadd.f32 0.0, %v1526
    %v1528 = vpop.f32.mrf.mxu0
    %v1529 = vadd.f32 0.0, %v1528
    %1530 = vdwg.mxu0
    %1531 = vmatpush.bf16.msra.mxu0 %v1138
    %1532 = vmatpush.bf16.msra.mxu0 %v1129
    %1533 = vmatpush.bf16.msra.mxu0 %v1120
    %1534 = vmatpush.bf16.msra.mxu0 %v1111
    %1535 = vmatpush.bf16.msra.mxu0 %v1102
    %1536 = vmatpush.bf16.msra.mxu0 %v1093
    %1537 = vmatpush.bf16.msra.mxu0 %v1084
    %1538 = vmatpush.bf16.msra.mxu0 %v1075
    %1539 = vmatmul.bf16.gmra.mxu0 %v87
    %v1540 = vpop.f32.mrf.mxu0
    %v1541 = vadd.f32 %v1527, %v1540
    %v1542 = vpop.f32.mrf.mxu0
    %v1543 = vadd.f32 %v1529, %v1542
    %1544 = vdwg.mxu0
    %1545 = vmatpush.bf16.msra.mxu0 %v1210
    %1546 = vmatpush.bf16.msra.mxu0 %v1201
    %1547 = vmatpush.bf16.msra.mxu0 %v1192
    %1548 = vmatpush.bf16.msra.mxu0 %v1183
    %1549 = vmatpush.bf16.msra.mxu0 %v1174
    %1550 = vmatpush.bf16.msra.mxu0 %v1165
    %1551 = vmatpush.bf16.msra.mxu0 %v1156
    %1552 = vmatpush.bf16.msra.mxu0 %v1147
    %1553 = vmatmul.bf16.gmra.mxu0 %v88
    %v1554 = vpop.f32.mrf.mxu0
    %v1555 = vadd.f32 %v1541, %v1554
    %v1556 = vpop.f32.mrf.mxu0
    %v1557 = vadd.f32 %v1543, %v1556
    %1558 = vdwg.mxu0
    %1559 = vmatpush.bf16.msra.mxu0 %v1067
    %1560 = vmatpush.bf16.msra.mxu0 %v1058
    %1561 = vmatpush.bf16.msra.mxu0 %v1049
    %1562 = vmatpush.bf16.msra.mxu0 %v1040
    %1563 = vmatpush.bf16.msra.mxu0 %v1031
    %1564 = vmatpush.bf16.msra.mxu0 %v1022
    %1565 = vmatpush.bf16.msra.mxu0 %v1013
    %1566 = vmatpush.bf16.msra.mxu0 %v1004
    %1567 = vmatmul.bf16.gmra.mxu0 %v86
    %v1568 = vpop.f32.mrf.mxu0
    %v1569 = vadd.f32 0.0, %v1568
    %v1570 = vpop.f32.mrf.mxu0
    %v1571 = vadd.f32 0.0, %v1570
    %1572 = vdwg.mxu0
    %1573 = vmatpush.bf16.msra.mxu0 %v1139
    %1574 = vmatpush.bf16.msra.mxu0 %v1130
    %1575 = vmatpush.bf16.msra.mxu0 %v1121
    %1576 = vmatpush.bf16.msra.mxu0 %v1112
    %1577 = vmatpush.bf16.msra.mxu0 %v1103
    %1578 = vmatpush.bf16.msra.mxu0 %v1094
    %1579 = vmatpush.bf16.msra.mxu0 %v1085
    %1580 = vmatpush.bf16.msra.mxu0 %v1076
    %1581 = vmatmul.bf16.gmra.mxu0 %v87
    %v1582 = vpop.f32.mrf.mxu0
    %v1583 = vadd.f32 %v1569, %v1582
    %v1584 = vpop.f32.mrf.mxu0
    %v1585 = vadd.f32 %v1571, %v1584
    %1586 = vdwg.mxu0
    %1587 = vmatpush.bf16.msra.mxu0 %v1211
    %1588 = vmatpush.bf16.msra.mxu0 %v1202
    %1589 = vmatpush.bf16.msra.mxu0 %v1193
    %1590 = vmatpush.bf16.msra.mxu0 %v1184
    %1591 = vmatpush.bf16.msra.mxu0 %v1175
    %1592 = vmatpush.bf16.msra.mxu0 %v1166
    %1593 = vmatpush.bf16.msra.mxu0 %v1157
    %1594 = vmatpush.bf16.msra.mxu0 %v1148
    %1595 = vmatmul.bf16.gmra.mxu0 %v88
    %v1596 = vpop.f32.mrf.mxu0
    %v1597 = vadd.f32 %v1583, %v1596
    %v1598 = vpop.f32.mrf.mxu0
    %v1599 = vadd.f32 %v1585, %v1598
    %1600 = vdwg.mxu0
    %1601 = vmatpush.bf16.msra.mxu0 %v1068
    %1602 = vmatpush.bf16.msra.mxu0 %v1059
    %1603 = vmatpush.bf16.msra.mxu0 %v1050
    %1604 = vmatpush.bf16.msra.mxu0 %v1041
    %1605 = vmatpush.bf16.msra.mxu0 %v1032
    %1606 = vmatpush.bf16.msra.mxu0 %v1023
    %1607 = vmatpush.bf16.msra.mxu0 %v1014
    %1608 = vmatpush.bf16.msra.mxu0 %v1005
    %1609 = vmatmul.bf16.gmra.mxu0 %v86
    %v1610 = vpop.f32.mrf.mxu0
    %v1611 = vadd.f32 0.0, %v1610
    %v1612 = vpop.f32.mrf.mxu0
    %v1613 = vadd.f32 0.0, %v1612
    %1614 = vdwg.mxu0
    %1615 = vmatpush.bf16.msra.mxu0 %v1140
    %1616 = vmatpush.bf16.msra.mxu0 %v1131
    %1617 = vmatpush.bf16.msra.mxu0 %v1122
    %1618 = vmatpush.bf16.msra.mxu0 %v1113
    %1619 = vmatpush.bf16.msra.mxu0 %v1104
    %1620 = vmatpush.bf16.msra.mxu0 %v1095
    %1621 = vmatpush.bf16.msra.mxu0 %v1086
    %1622 = vmatpush.bf16.msra.mxu0 %v1077
    %1623 = vmatmul.bf16.gmra.mxu0 %v87
    %v1624 = vpop.f32.mrf.mxu0
    %v1625 = vadd.f32 %v1611, %v1624
    %v1626 = vpop.f32.mrf.mxu0
    %v1627 = vadd.f32 %v1613, %v1626
    %1628 = vdwg.mxu0
    %1629 = vmatpush.bf16.msra.mxu0 %v1212
    %1630 = vmatpush.bf16.msra.mxu0 %v1203
    %1631 = vmatpush.bf16.msra.mxu0 %v1194
    %1632 = vmatpush.bf16.msra.mxu0 %v1185
    %1633 = vmatpush.bf16.msra.mxu0 %v1176
    %1634 = vmatpush.bf16.msra.mxu0 %v1167
    %1635 = vmatpush.bf16.msra.mxu0 %v1158
    %1636 = vmatpush.bf16.msra.mxu0 %v1149
    %1637 = vmatmul.bf16.gmra.mxu0 %v88
    %v1638 = vpop.f32.mrf.mxu0
    %v1639 = vadd.f32 %v1625, %v1638
    %v1640 = vpop.f32.mrf.mxu0
    %v1641 = vadd.f32 %v1627, %v1640
    %1642 = vdwg.mxu0
    %1643 = vmatpush.bf16.msra.mxu0 %v1069
    %1644 = vmatpush.bf16.msra.mxu0 %v1060
    %1645 = vmatpush.bf16.msra.mxu0 %v1051
    %1646 = vmatpush.bf16.msra.mxu0 %v1042
    %1647 = vmatpush.bf16.msra.mxu0 %v1033
    %1648 = vmatpush.bf16.msra.mxu0 %v1024
    %1649 = vmatpush.bf16.msra.mxu0 %v1015
    %1650 = vmatpush.bf16.msra.mxu0 %v1006
    %1651 = vmatmul.bf16.gmra.mxu0 %v86
    %v1652 = vpop.f32.mrf.mxu0
    %v1653 = vadd.f32 0.0, %v1652
    %v1654 = vpop.f32.mrf.mxu0
    %v1655 = vadd.f32 0.0, %v1654
    %1656 = vdwg.mxu0
    %1657 = vmatpush.bf16.msra.mxu0 %v1141
    %1658 = vmatpush.bf16.msra.mxu0 %v1132
    %1659 = vmatpush.bf16.msra.mxu0 %v1123
    %1660 = vmatpush.bf16.msra.mxu0 %v1114
    %1661 = vmatpush.bf16.msra.mxu0 %v1105
    %1662 = vmatpush.bf16.msra.mxu0 %v1096
    %1663 = vmatpush.bf16.msra.mxu0 %v1087
    %1664 = vmatpush.bf16.msra.mxu0 %v1078
    %1665 = vmatmul.bf16.gmra.mxu0 %v87
    %v1666 = vpop.f32.mrf.mxu0
    %v1667 = vadd.f32 %v1653, %v1666
    %v1668 = vpop.f32.mrf.mxu0
    %v1669 = vadd.f32 %v1655, %v1668
    %1670 = vdwg.mxu0
    %1671 = vmatpush.bf16.msra.mxu0 %v1213
    %1672 = vmatpush.bf16.msra.mxu0 %v1204
    %1673 = vmatpush.bf16.msra.mxu0 %v1195
    %1674 = vmatpush.bf16.msra.mxu0 %v1186
    %1675 = vmatpush.bf16.msra.mxu0 %v1177
    %1676 = vmatpush.bf16.msra.mxu0 %v1168
    %1677 = vmatpush.bf16.msra.mxu0 %v1159
    %1678 = vmatpush.bf16.msra.mxu0 %v1150
    %1679 = vmatmul.bf16.gmra.mxu0 %v88
    %v1680 = vpop.f32.mrf.mxu0
    %v1681 = vadd.f32 %v1667, %v1680
    %v1682 = vpop.f32.mrf.mxu0
    %v1683 = vadd.f32 %v1669, %v1682
    %1684 = vdwg.mxu0
    %1685 = vmatpush.bf16.msra.mxu0 %v1070
    %1686 = vmatpush.bf16.msra.mxu0 %v1061
    %1687 = vmatpush.bf16.msra.mxu0 %v1052
    %1688 = vmatpush.bf16.msra.mxu0 %v1043
    %1689 = vmatpush.bf16.msra.mxu0 %v1034
    %1690 = vmatpush.bf16.msra.mxu0 %v1025
    %1691 = vmatpush.bf16.msra.mxu0 %v1016
    %1692 = vmatpush.bf16.msra.mxu0 %v1007
    %1693 = vmatmul.bf16.gmra.mxu0 %v86
    %v1694 = vpop.f32.mrf.mxu0
    %v1695 = vadd.f32 0.0, %v1694
    %v1696 = vpop.f32.mrf.mxu0
    %v1697 = vadd.f32 0.0, %v1696
    %1698 = vdwg.mxu0
    %1699 = vmatpush.bf16.msra.mxu0 %v1142
    %1700 = vmatpush.bf16.msra.mxu0 %v1133
    %1701 = vmatpush.bf16.msra.mxu0 %v1124
    %1702 = vmatpush.bf16.msra.mxu0 %v1115
    %1703 = vmatpush.bf16.msra.mxu0 %v1106
    %1704 = vmatpush.bf16.msra.mxu0 %v1097
    %1705 = vmatpush.bf16.msra.mxu0 %v1088
    %1706 = vmatpush.bf16.msra.mxu0 %v1079
    %1707 = vmatmul.bf16.gmra.mxu0 %v87
    %v1708 = vpop.f32.mrf.mxu0
    %v1709 = vadd.f32 %v1695, %v1708
    %v1710 = vpop.f32.mrf.mxu0
    %v1711 = vadd.f32 %v1697, %v1710
    %1712 = vdwg.mxu0
    %1713 = vmatpush.bf16.msra.mxu0 %v1214
    %1714 = vmatpush.bf16.msra.mxu0 %v1205
    %1715 = vmatpush.bf16.msra.mxu0 %v1196
    %1716 = vmatpush.bf16.msra.mxu0 %v1187
    %1717 = vmatpush.bf16.msra.mxu0 %v1178
    %1718 = vmatpush.bf16.msra.mxu0 %v1169
    %1719 = vmatpush.bf16.msra.mxu0 %v1160
    %1720 = vmatpush.bf16.msra.mxu0 %v1151
    %1721 = vmatmul.bf16.gmra.mxu0 %v88
    %v1722 = vpop.f32.mrf.mxu0
    %v1723 = vadd.f32 %v1709, %v1722
    %v1724 = vpop.f32.mrf.mxu0
    %v1725 = vadd.f32 %v1711, %v1724
    %1726 = vdwg.mxu0
    %1727 = vmatpush.bf16.msra.mxu0 %v1071
    %1728 = vmatpush.bf16.msra.mxu0 %v1062
    %1729 = vmatpush.bf16.msra.mxu0 %v1053
    %1730 = vmatpush.bf16.msra.mxu0 %v1044
    %1731 = vmatpush.bf16.msra.mxu0 %v1035
    %1732 = vmatpush.bf16.msra.mxu0 %v1026
    %1733 = vmatpush.bf16.msra.mxu0 %v1017
    %1734 = vmatpush.bf16.msra.mxu0 %v1008
    %1735 = vmatmul.bf16.gmra.mxu0 %v86
    %v1736 = vpop.f32.mrf.mxu0
    %v1737 = vadd.f32 0.0, %v1736
    %v1738 = vpop.f32.mrf.mxu0
    %v1739 = vadd.f32 0.0, %v1738
    %1740 = vdwg.mxu0
    %1741 = vmatpush.bf16.msra.mxu0 %v1143
    %1742 = vmatpush.bf16.msra.mxu0 %v1134
    %1743 = vmatpush.bf16.msra.mxu0 %v1125
    %1744 = vmatpush.bf16.msra.mxu0 %v1116
    %1745 = vmatpush.bf16.msra.mxu0 %v1107
    %1746 = vmatpush.bf16.msra.mxu0 %v1098
    %1747 = vmatpush.bf16.msra.mxu0 %v1089
    %1748 = vmatpush.bf16.msra.mxu0 %v1080
    %1749 = vmatmul.bf16.gmra.mxu0 %v87
    %v1750 = vpop.f32.mrf.mxu0
    %v1751 = vadd.f32 %v1737, %v1750
    %v1752 = vpop.f32.mrf.mxu0
    %v1753 = vadd.f32 %v1739, %v1752
    %1754 = vdwg.mxu0
    %1755 = vmatpush.bf16.msra.mxu0 %v1215
    %1756 = vmatpush.bf16.msra.mxu0 %v1206
    %1757 = vmatpush.bf16.msra.mxu0 %v1197
    %1758 = vmatpush.bf16.msra.mxu0 %v1188
    %1759 = vmatpush.bf16.msra.mxu0 %v1179
    %1760 = vmatpush.bf16.msra.mxu0 %v1170
    %1761 = vmatpush.bf16.msra.mxu0 %v1161
    %1762 = vmatpush.bf16.msra.mxu0 %v1152
    %1763 = vmatmul.bf16.gmra.mxu0 %v88
    %v1764 = vpop.f32.mrf.mxu0
    %v1765 = vadd.f32 %v1751, %v1764
    %v1766 = vpop.f32.mrf.mxu0
    %v1767 = vadd.f32 %v1753, %v1766
    %1768 = vdwg.mxu0
    %1769 = vmatpush.bf16.msra.mxu0 %v1072
    %1770 = vmatpush.bf16.msra.mxu0 %v1063
    %1771 = vmatpush.bf16.msra.mxu0 %v1054
    %1772 = vmatpush.bf16.msra.mxu0 %v1045
    %1773 = vmatpush.bf16.msra.mxu0 %v1036
    %1774 = vmatpush.bf16.msra.mxu0 %v1027
    %1775 = vmatpush.bf16.msra.mxu0 %v1018
    %1776 = vmatpush.bf16.msra.mxu0 %v1009
    %1777 = vmatmul.bf16.gmra.mxu0 %v86
    %v1778 = vpop.f32.mrf.mxu0
    %v1779 = vadd.f32 0.0, %v1778
    %v1780 = vpop.f32.mrf.mxu0
    %v1781 = vadd.f32 0.0, %v1780
    %1782 = vdwg.mxu0
    %1783 = vmatpush.bf16.msra.mxu0 %v1144
    %1784 = vmatpush.bf16.msra.mxu0 %v1135
    %1785 = vmatpush.bf16.msra.mxu0 %v1126
    %1786 = vmatpush.bf16.msra.mxu0 %v1117
    %1787 = vmatpush.bf16.msra.mxu0 %v1108
    %1788 = vmatpush.bf16.msra.mxu0 %v1099
    %1789 = vmatpush.bf16.msra.mxu0 %v1090
    %1790 = vmatpush.bf16.msra.mxu0 %v1081
    %1791 = vmatmul.bf16.gmra.mxu0 %v87
    %v1792 = vpop.f32.mrf.mxu0
    %v1793 = vadd.f32 %v1779, %v1792
    %v1794 = vpop.f32.mrf.mxu0
    %v1795 = vadd.f32 %v1781, %v1794
    %1796 = vdwg.mxu0
    %1797 = vmatpush.bf16.msra.mxu0 %v1216
    %1798 = vmatpush.bf16.msra.mxu0 %v1207
    %1799 = vmatpush.bf16.msra.mxu0 %v1198
    %1800 = vmatpush.bf16.msra.mxu0 %v1189
    %1801 = vmatpush.bf16.msra.mxu0 %v1180
    %1802 = vmatpush.bf16.msra.mxu0 %v1171
    %1803 = vmatpush.bf16.msra.mxu0 %v1162
    %1804 = vmatpush.bf16.msra.mxu0 %v1153
    %1805 = vmatmul.bf16.gmra.mxu0 %v88
    %v1806 = vpop.f32.mrf.mxu0
    %v1807 = vadd.f32 %v1793, %v1806
    %v1808 = vpop.f32.mrf.mxu0
    %v1809 = vadd.f32 %v1795, %v1808
    %1810 = vdwg.mxu0
    %v1811 = vpack.c.bf16 %v1513, %v1471
    %v1812 = vpack.c.bf16 %v1597, %v1555
    %v1813 = vpack.c.bf16 %v1681, %v1639
    %v1814 = vpack.c.bf16 %v1765, %v1723
    %v1815 = vpack.c.bf16 %v1807, %v1807
    %v1816 = vpack.c.bf16 %v1515, %v1473
    %v1817 = vpack.c.bf16 %v1599, %v1557
    %v1818 = vpack.c.bf16 %v1683, %v1641
    %v1819 = vpack.c.bf16 %v1767, %v1725
    %v1820 = vpack.c.bf16 %v1809, %v1809
    %v1821 = vlaneseq
    %v1822 = vshrl.u32 %v1821, 7
    %v1823 = vlaneseq
    %v1824 = vand.u32 %v1823, 127
    %vm1825 = vcmp.ge.s32.totalorder %v1822, %v1824
    %v1826 = vsel %vm1825, 0.0, -1e+30
    %v1827 = vld [vmem:[#allocation8] sm:$0xff]
    %v1828 = vld [vmem:[#allocation8 + $0x8] sm:$0xf]
    %v1829 = vld [vmem:[#allocation8 + $0xc] sm:$0xff]
    %v1830 = vld [vmem:[#allocation8 + $0x14] sm:$0xf]
    %v1831 = vld [vmem:[#allocation8 + $0x18] sm:$0xff]
    %v1832 = vld [vmem:[#allocation8 + $0x20] sm:$0xf]
    %v1833 = vld [vmem:[#allocation8 + $0x24] sm:$0xff]
    %v1834 = vld [vmem:[#allocation8 + $0x2c] sm:$0xf]
    %v1835 = vld [vmem:[#allocation8 + $0x30] sm:$0xff]
    %v1836 = vld [vmem:[#allocation8 + $0x38] sm:$0xf]
    %v1837 = vld [vmem:[#allocation8 + $0x3c] sm:$0xff]
    %v1838 = vld [vmem:[#allocation8 + $0x44] sm:$0xf]
    %v1839 = vld [vmem:[#allocation8 + $0x48] sm:$0xff]
    %v1840 = vld [vmem:[#allocation8 + $0x50] sm:$0xf]
    %v1841 = vld [vmem:[#allocation8 + $0x54] sm:$0xff]
    %v1842 = vld [vmem:[#allocation8 + $0x5c] sm:$0xf]
    %v1843 = vld [vmem:[#allocation8 + $0x60] sm:$0xff]
    %v1844 = vld [vmem:[#allocation8 + $0x68] sm:$0xf]
    %v1845 = vld [vmem:[#allocation8 + $0x6c] sm:$0xff]
    %v1846 = vld [vmem:[#allocation8 + $0x74] sm:$0xf]
    %v1847 = vld [vmem:[#allocation8 + $0x78] sm:$0xff]
    %v1848 = vld [vmem:[#allocation8 + $0x80] sm:$0xf]
    %v1849 = vld [vmem:[#allocation8 + $0x84] sm:$0xff]
    %v1850 = vld [vmem:[#allocation8 + $0x8c] sm:$0xf]
    %v1851 = vld [vmem:[#allocation8 + $0x90] sm:$0xff]
    %v1852 = vld [vmem:[#allocation8 + $0x98] sm:$0xf]
    %v1853 = vld [vmem:[#allocation8 + $0x9c] sm:$0xff]
    %v1854 = vld [vmem:[#allocation8 + $0xa4] sm:$0xf]
    %v1855 = vld [vmem:[#allocation8 + $0xa8] sm:$0xff]
    %v1856 = vld [vmem:[#allocation8 + $0xb0] sm:$0xf]
    %v1857 = vld [vmem:[#allocation8 + $0xb4] sm:$0xff]
    %v1858 = vld [vmem:[#allocation8 + $0xbc] sm:$0xf]
    %v1859 = vld [vmem:[#allocation8 + $0xc0] sm:$0xff]
    %v1860 = vld [vmem:[#allocation8 + $0xc8] sm:$0xf]
    %v1861 = vld [vmem:[#allocation8 + $0xcc] sm:$0xff]
    %v1862 = vld [vmem:[#allocation8 + $0xd4] sm:$0xf]
    %v1863 = vld [vmem:[#allocation8 + $0xd8] sm:$0xff]
    %v1864 = vld [vmem:[#allocation8 + $0xe0] sm:$0xf]
    %v1865 = vld [vmem:[#allocation8 + $0xe4] sm:$0xff]
    %v1866 = vld [vmem:[#allocation8 + $0xec] sm:$0xf]
    %v1867 = vld [vmem:[#allocation8 + $0xf0] sm:$0xff]
    %v1868 = vld [vmem:[#allocation8 + $0xf8] sm:$0xf]
    %v1869 = vld [vmem:[#allocation8 + $0xfc] sm:$0xff]
    %v1870 = vld [vmem:[#allocation8 + $0x104] sm:$0xf]
    %v1871 = vld [vmem:[#allocation8 + $0x108] sm:$0xff]
    %v1872 = vld [vmem:[#allocation8 + $0x110] sm:$0xf]
    %v1873 = vld [vmem:[#allocation8 + $0x114] sm:$0xff]
    %v1874 = vld [vmem:[#allocation8 + $0x11c] sm:$0xf]
    %v1875 = vld [vmem:[#allocation8 + $0x120] sm:$0xff]
    %v1876 = vld [vmem:[#allocation8 + $0x128] sm:$0xf]
    %v1877 = vld [vmem:[#allocation8 + $0x12c] sm:$0xff]
    %v1878 = vld [vmem:[#allocation8 + $0x134] sm:$0xf]
    %v1879 = vld [vmem:[#allocation8 + $0x138] sm:$0xff]
    %v1880 = vld [vmem:[#allocation8 + $0x140] sm:$0xf]
    %v1881 = vld [vmem:[#allocation8 + $0x144] sm:$0xff]
    %v1882 = vld [vmem:[#allocation8 + $0x14c] sm:$0xf]
    %v1883 = vld [vmem:[#allocation8 + $0x150] sm:$0xff]
    %v1884 = vld [vmem:[#allocation8 + $0x158] sm:$0xf]
    %v1885 = vld [vmem:[#allocation8 + $0x15c] sm:$0xff]
    %v1886 = vld [vmem:[#allocation8 + $0x164] sm:$0xf]
    %v1887 = vld [vmem:[#allocation8 + $0x168] sm:$0xff]
    %v1888 = vld [vmem:[#allocation8 + $0x170] sm:$0xf]
    %v1889 = vld [vmem:[#allocation8 + $0x174] sm:$0xff]
    %v1890 = vld [vmem:[#allocation8 + $0x17c] sm:$0xf]
    %v1891 = vld [vmem:[#allocation8 + $0x180] sm:$0xff]
    %v1892 = vld [vmem:[#allocation8 + $0x188] sm:$0xf]
    %v1893 = vld [vmem:[#allocation8 + $0x18c] sm:$0xff]
    %v1894 = vld [vmem:[#allocation8 + $0x194] sm:$0xf]
    %v1895 = vld [vmem:[#allocation8 + $0x198] sm:$0xff]
    %v1896 = vld [vmem:[#allocation8 + $0x1a0] sm:$0xf]
    %v1897 = vld [vmem:[#allocation8 + $0x1a4] sm:$0xff]
    %v1898 = vld [vmem:[#allocation8 + $0x1ac] sm:$0xf]
    %v1899 = vld [vmem:[#allocation8 + $0x1b0] sm:$0xff]
    %v1900 = vld [vmem:[#allocation8 + $0x1b8] sm:$0xf]
    %v1901 = vld [vmem:[#allocation8 + $0x1bc] sm:$0xff]
    %v1902 = vld [vmem:[#allocation8 + $0x1c4] sm:$0xf]
    %v1903 = vld [vmem:[#allocation8 + $0x1c8] sm:$0xff]
    %v1904 = vld [vmem:[#allocation8 + $0x1d0] sm:$0xf]
    %v1905 = vld [vmem:[#allocation8 + $0x1d4] sm:$0xff]
    %v1906 = vld [vmem:[#allocation8 + $0x1dc] sm:$0xf]
    %v1907 = vld [vmem:[#allocation8 + $0x1e0] sm:$0xff]
    %v1908 = vld [vmem:[#allocation8 + $0x1e8] sm:$0xf]
    %v1909 = vld [vmem:[#allocation8 + $0x1ec] sm:$0xff]
    %v1910 = vld [vmem:[#allocation8 + $0x1f4] sm:$0xf]
    %v1911 = vld [vmem:[#allocation8 + $0x1f8] sm:$0xff]
    %v1912 = vld [vmem:[#allocation8 + $0x200] sm:$0xf]
    %v1913 = vld [vmem:[#allocation8 + $0x204] sm:$0xff]
    %v1914 = vld [vmem:[#allocation8 + $0x20c] sm:$0xf]
    %v1915 = vld [vmem:[#allocation8 + $0x210] sm:$0xff]
    %v1916 = vld [vmem:[#allocation8 + $0x218] sm:$0xf]
    %v1917 = vld [vmem:[#allocation8 + $0x21c] sm:$0xff]
    %v1918 = vld [vmem:[#allocation8 + $0x224] sm:$0xf]
    %v1919 = vld [vmem:[#allocation8 + $0x228] sm:$0xff]
    %v1920 = vld [vmem:[#allocation8 + $0x230] sm:$0xf]
    %v1921 = vld [vmem:[#allocation8 + $0x234] sm:$0xff]
    %v1922 = vld [vmem:[#allocation8 + $0x23c] sm:$0xf]
    %v1923 = vld [vmem:[#allocation9] sm:$0x7]
    %v1926 = vrot.slane %v1812, 4
    %v1927 = vrot.slane %v1817, 4
    %vm1928 = vcmask 523264
    %v1930 = vsel %vm1928, %v1811, 0
    %v1933 = vsel %vm1928, %v1926, 0
    %1935 = vmatpush.bf16.xpose.msra.mxu0 0
    %1936 = vmatpush.bf16.xpose.msra.mxu0 0
    %1937 = vmatpush.bf16.xpose.msra.mxu0 0
    %1938 = vmatpush.bf16.xpose.msra.mxu0 0
    %1939 = vmatpush.bf16.xpose.msra.mxu0 0
    %1940 = vmatpush.bf16.xpose.msra.mxu0 0
    %1941 = vmatpush.bf16.xpose.msra.mxu0 0
    %1942 = vmatpush.bf16.xpose.msra.mxu0 %v1933
    %1943 = vmatmul.bf16.gmra.mxu0 %v1930
    %v1944 = vpop.f32.mrf.mxu0
    %v1945 = vadd.f32 %v1826, %v1944
    %v1946 = vpop.f32.mrf.mxu0
    %1947 = vdwg.mxu0
    %v1949 = vsel %vm1928, %v1816, 0
    %v1952 = vsel %vm1928, %v1927, 0
    %1954 = vmatpush.bf16.xpose.msra.mxu0 0
    %1955 = vmatpush.bf16.xpose.msra.mxu0 0
    %1956 = vmatpush.bf16.xpose.msra.mxu0 0
    %1957 = vmatpush.bf16.xpose.msra.mxu0 0
    %1958 = vmatpush.bf16.xpose.msra.mxu0 0
    %1959 = vmatpush.bf16.xpose.msra.mxu0 0
    %1960 = vmatpush.bf16.xpose.msra.mxu0 0
    %1961 = vmatpush.bf16.xpose.msra.mxu0 %v1952
    %1962 = vmatmul.bf16.gmra.mxu0 %v1949
    %v1963 = vpop.f32.mrf.mxu0
    %v1964 = vadd.f32 %v1826, %v1963
    %v1965 = vpop.f32.mrf.mxu0
    %1966 = vdwg.mxu0
    %vm1967 = vcmask 64512
    %v1968 = vsel %vm1967, %v1945, -inf
    %1969 = vmax.xlane.f32.xlu0 %v1968
    %v1970 = vpop.xlane.xlu0 %1969
    %v1971 = vsel %vm1967, %v1964, -inf
    %1972 = vmax.xlane.f32.xlu0 %v1971
    %v1973 = vpop.xlane.xlu0 %1972
    %v1974 = vsub.f32 %v1945, %v1970
    %v1975 = vsub.f32 %v1964, %v1973
    %v1976 = vmul.f32 %v1974, 1.442695
    %v1977 = vpow.pop %v1976
    %v1978 = vmul.f32 %v1975, 1.442695
    %v1979 = vpow.pop %v1978
    %v1980 = vsel %vm1967, %v1977, 0.0
    %1981 = vadd.xlane.f32.xlu0 %v1980
    %v1982 = vpop.xlane.xlu0 %1981
    %v1983 = vsel %vm1967, %v1979, 0.0
    %1984 = vadd.xlane.f32.xlu0 %v1983
    %v1985 = vpop.xlane.xlu0 %1984
    %v1986 = vrcp.pop %v1982
    %v1987 = vrcp.pop %v1985
    %v1988 = vmul.f32 %v1977, %v1986
    %v1989 = vmul.f32 %v1979, %v1987
    %v1990 = vpack.c.bf16 %v1988, %v1988
    %v1991 = vpack.c.bf16 %v1989, %v1989
    %v1993 = vsel %vm1967, %v1990, 0
    %vm1995 = vcmask 1043456
    %v1997 = vsel %vm1995, %v1814, 0
    %1999 = vmatpush.bf16.msra.mxu0 0
    %2000 = vmatpush.bf16.msra.mxu0 0
    %2001 = vmatpush.bf16.msra.mxu0 0
    %2002 = vmatpush.bf16.msra.mxu0 0
    %2003 = vmatpush.bf16.msra.mxu0 0
    %2004 = vmatpush.bf16.msra.mxu0 0
    %2005 = vmatpush.bf16.msra.mxu0 0
    %2006 = vmatpush.bf16.msra.mxu0 %v1997
    %2007 = vmatmul.bf16.gmra.mxu0 %v1993
    %v2008 = vpop.f32.mrf.mxu0
    %v2009 = vadd.f32 0.0, %v2008
    %v2010 = vpop.f32.mrf.mxu0
    %2011 = vdwg.mxu0
    %v2013 = vsel %vm1967, %v1991, 0
    %v2016 = vsel %vm1995, %v1819, 0
    %2018 = vmatpush.bf16.msra.mxu0 0
    %2019 = vmatpush.bf16.msra.mxu0 0
    %2020 = vmatpush.bf16.msra.mxu0 0
    %2021 = vmatpush.bf16.msra.mxu0 0
    %2022 = vmatpush.bf16.msra.mxu0 0
    %2023 = vmatpush.bf16.msra.mxu0 0
    %2024 = vmatpush.bf16.msra.mxu0 0
    %2025 = vmatpush.bf16.msra.mxu0 %v2016
    %2026 = vmatmul.bf16.gmra.mxu0 %v2013
    %v2027 = vpop.f32.mrf.mxu0
    %v2028 = vadd.f32 0.0, %v2027
    %v2029 = vpop.f32.mrf.mxu0
    %2030 = vdwg.mxu0
    %v2031 = vpack.c.bf16 %v2009, %v2009
    %v2032 = vpack.c.bf16 %v2028, %v2028
    %2033 = vrot.lane.b32.xlu0 %v1812, 64
    %v2034 = vpop.permute.xlu0 %2033
    %2035 = vrot.lane.b32.xlu0 %v1817, 64
    %v2036 = vpop.permute.xlu0 %2035
    %v2037 = vrot.slane %v2034, 4
    %v2038 = vrot.slane %v2036, 4
    %v2040 = vunpack.c.l.b16 %v1811
    %v2041 = vpack.c.b16 %v2040, %v2040
    %2042 = vrot.lane.b32.xlu0 %v2041, 64
    %v2043 = vpop.permute.xlu0 %2042
    %v2045 = vsel %vm1928, %v2043, 0
    %v2048 = vsel %vm1928, %v2037, 0
    %2050 = vmatpush.bf16.xpose.msra.mxu0 0
    %2051 = vmatpush.bf16.xpose.msra.mxu0 0
    %2052 = vmatpush.bf16.xpose.msra.mxu0 0
    %2053 = vmatpush.bf16.xpose.msra.mxu0 0
    %2054 = vmatpush.bf16.xpose.msra.mxu0 0
    %2055 = vmatpush.bf16.xpose.msra.mxu0 0
    %2056 = vmatpush.bf16.xpose.msra.mxu0 0
    %2057 = vmatpush.bf16.xpose.msra.mxu0 %v2048
    %2058 = vmatmul.bf16.gmra.mxu0 %v2045
    %v2059 = vpop.f32.mrf.mxu0
    %v2060 = vadd.f32 %v1826, %v2059
    %v2061 = vpop.f32.mrf.mxu0
    %2062 = vdwg.mxu0
    %v2064 = vunpack.c.l.b16 %v1816
    %v2065 = vpack.c.b16 %v2064, %v2064
    %2066 = vrot.lane.b32.xlu0 %v2065, 64
    %v2067 = vpop.permute.xlu0 %2066
    %v2069 = vsel %vm1928, %v2067, 0
    %v2072 = vsel %vm1928, %v2038, 0
    %2074 = vmatpush.bf16.xpose.msra.mxu0 0
    %2075 = vmatpush.bf16.xpose.msra.mxu0 0
    %2076 = vmatpush.bf16.xpose.msra.mxu0 0
    %2077 = vmatpush.bf16.xpose.msra.mxu0 0
    %2078 = vmatpush.bf16.xpose.msra.mxu0 0
    %2079 = vmatpush.bf16.xpose.msra.mxu0 0
    %2080 = vmatpush.bf16.xpose.msra.mxu0 0
    %2081 = vmatpush.bf16.xpose.msra.mxu0 %v2072
    %2082 = vmatmul.bf16.gmra.mxu0 %v2069
    %v2083 = vpop.f32.mrf.mxu0
    %v2084 = vadd.f32 %v1826, %v2083
    %v2085 = vpop.f32.mrf.mxu0
    %2086 = vdwg.mxu0
    %v2087 = vsel %vm1967, %v2060, -inf
    %2088 = vmax.xlane.f32.xlu0 %v2087
    %v2089 = vpop.xlane.xlu0 %2088
    %v2090 = vsel %vm1967, %v2084, -inf
    %2091 = vmax.xlane.f32.xlu0 %v2090
    %v2092 = vpop.xlane.xlu0 %2091
    %v2093 = vsub.f32 %v2060, %v2089
    %v2094 = vsub.f32 %v2084, %v2092
    %v2095 = vmul.f32 %v2093, 1.442695
    %v2096 = vpow.pop %v2095
    %v2097 = vmul.f32 %v2094, 1.442695
    %v2098 = vpow.pop %v2097
    %v2099 = vsel %vm1967, %v2096, 0.0
    %2100 = vadd.xlane.f32.xlu0 %v2099
    %v2101 = vpop.xlane.xlu0 %2100
    %v2102 = vsel %vm1967, %v2098, 0.0
    %2103 = vadd.xlane.f32.xlu0 %v2102
    %v2104 = vpop.xlane.xlu0 %2103
    %v2105 = vrcp.pop %v2101
    %v2106 = vrcp.pop %v2104
    %v2107 = vmul.f32 %v2096, %v2105
    %v2108 = vmul.f32 %v2098, %v2106
    %v2109 = vpack.c.bf16 %v2107, %v2107
    %v2110 = vpack.c.bf16 %v2108, %v2108
    %v2112 = vunpack.c.l.b16 %v1814
    %v2113 = vpack.c.b16 %v2112, %v2112
    %2114 = vrot.lane.b32.xlu0 %v2113, 64
    %v2115 = vpop.permute.xlu0 %2114
    %v2117 = vsel %vm1967, %v2109, 0
    %v2120 = vsel %vm1995, %v2115, 0
    %2122 = vmatpush.bf16.msra.mxu0 0
    %2123 = vmatpush.bf16.msra.mxu0 0
    %2124 = vmatpush.bf16.msra.mxu0 0
    %2125 = vmatpush.bf16.msra.mxu0 0
    %2126 = vmatpush.bf16.msra.mxu0 0
    %2127 = vmatpush.bf16.msra.mxu0 0
    %2128 = vmatpush.bf16.msra.mxu0 0
    %2129 = vmatpush.bf16.msra.mxu0 %v2120
    %2130 = vmatmul.bf16.gmra.mxu0 %v2117
    %v2131 = vpop.f32.mrf.mxu0
    %v2132 = vadd.f32 0.0, %v2131
    %v2133 = vpop.f32.mrf.mxu0
    %2134 = vdwg.mxu0
    %v2136 = vunpack.c.l.b16 %v1819
    %v2137 = vpack.c.b16 %v2136, %v2136
    %2138 = vrot.lane.b32.xlu0 %v2137, 64
    %v2139 = vpop.permute.xlu0 %2138
    %v2141 = vsel %vm1967, %v2110, 0
    %v2144 = vsel %vm1995, %v2139, 0
    %2146 = vmatpush.bf16.msra.mxu0 0
    %2147 = vmatpush.bf16.msra.mxu0 0
    %2148 = vmatpush.bf16.msra.mxu0 0
    %2149 = vmatpush.bf16.msra.mxu0 0
    %2150 = vmatpush.bf16.msra.mxu0 0
    %2151 = vmatpush.bf16.msra.mxu0 0
    %2152 = vmatpush.bf16.msra.mxu0 0
    %2153 = vmatpush.bf16.msra.mxu0 %v2144
    %2154 = vmatmul.bf16.gmra.mxu0 %v2141
    %v2155 = vpop.f32.mrf.mxu0
    %v2156 = vadd.f32 0.0, %v2155
    %v2157 = vpop.f32.mrf.mxu0
    %2158 = vdwg.mxu0
    %v2159 = vpack.c.bf16 %v2132, %v2132
    %v2160 = vpack.c.bf16 %v2156, %v2156
    %v2163 = vunpack.c.l.b16 %v2159
    %v2164 = vunpack.c.l.b16 %v2160
    %v2165 = vpack.c.b16 %v2163, %v2163
    %v2166 = vpack.c.b16 %v2164, %v2164
    %2167 = vrot.lane.b32.xlu0 %v2165, 64
    %v2168 = vpop.permute.xlu0 %2167
    %2169 = vrot.lane.b32.xlu0 %v2166, 64
    %v2170 = vpop.permute.xlu0 %2169
    %v2173 = vsel %vm1928, %v2031, %v2168
    %v2177 = vsel %vm1928, %v2032, %v2170
    %2179 = vst [vmem:[#allocation2] sm:$0xf] %v2173
    %2180 = vst [vmem:[#allocation2 + $0xc] sm:$0xf] %v2177
    %v2181 = vrot.slane %v1811, 4
    %v2182 = vrot.slane %v1816, 4
    %v2183 = vrot.slane %v1814, 4
    %v2184 = vrot.slane %v1819, 4
    %v2186 = vsel %vm1928, %v2181, 0
    %v2189 = vsel %vm1928, %v1813, 0
    %2191 = vmatpush.bf16.xpose.msra.mxu0 0
    %2192 = vmatpush.bf16.xpose.msra.mxu0 0
    %2193 = vmatpush.bf16.xpose.msra.mxu0 0
    %2194 = vmatpush.bf16.xpose.msra.mxu0 0
    %2195 = vmatpush.bf16.xpose.msra.mxu0 0
    %2196 = vmatpush.bf16.xpose.msra.mxu0 0
    %2197 = vmatpush.bf16.xpose.msra.mxu0 0
    %2198 = vmatpush.bf16.xpose.msra.mxu0 %v2189
    %2199 = vmatmul.bf16.gmra.mxu0 %v2186
    %v2200 = vpop.f32.mrf.mxu0
    %v2201 = vadd.f32 %v1826, %v2200
    %v2202 = vpop.f32.mrf.mxu0
    %2203 = vdwg.mxu0
    %v2205 = vsel %vm1928, %v2182, 0
    %v2208 = vsel %vm1928, %v1818, 0
    %2210 = vmatpush.bf16.xpose.msra.mxu0 0
    %2211 = vmatpush.bf16.xpose.msra.mxu0 0
    %2212 = vmatpush.bf16.xpose.msra.mxu0 0
    %2213 = vmatpush.bf16.xpose.msra.mxu0 0
    %2214 = vmatpush.bf16.xpose.msra.mxu0 0
    %2215 = vmatpush.bf16.xpose.msra.mxu0 0
    %2216 = vmatpush.bf16.xpose.msra.mxu0 0
    %2217 = vmatpush.bf16.xpose.msra.mxu0 %v2208
    %2218 = vmatmul.bf16.gmra.mxu0 %v2205
    %v2219 = vpop.f32.mrf.mxu0
    %v2220 = vadd.f32 %v1826, %v2219
    %v2221 = vpop.f32.mrf.mxu0
    %2222 = vdwg.mxu0
    %v2223 = vsel %vm1967, %v2201, -inf
    %2224 = vmax.xlane.f32.xlu0 %v2223
    %v2225 = vpop.xlane.xlu0 %2224
    %v2226 = vsel %vm1967, %v2220, -inf
    %2227 = vmax.xlane.f32.xlu0 %v2226
    %v2228 = vpop.xlane.xlu0 %2227
    %v2229 = vsub.f32 %v2201, %v2225
    %v2230 = vsub.f32 %v2220, %v2228
    %v2231 = vmul.f32 %v2229, 1.442695
    %v2232 = vpow.pop %v2231
    %v2233 = vmul.f32 %v2230, 1.442695
    %v2234 = vpow.pop %v2233
    %v2235 = vsel %vm1967, %v2232, 0.0
    %2236 = vadd.xlane.f32.xlu0 %v2235
    %v2237 = vpop.xlane.xlu0 %2236
    %v2238 = vsel %vm1967, %v2234, 0.0
    %2239 = vadd.xlane.f32.xlu0 %v2238
    %v2240 = vpop.xlane.xlu0 %2239
    %v2241 = vrcp.pop %v2237
    %v2242 = vrcp.pop %v2240
    %v2243 = vmul.f32 %v2232, %v2241
    %v2244 = vmul.f32 %v2234, %v2242
    %v2245 = vpack.c.bf16 %v2243, %v2243
    %v2246 = vpack.c.bf16 %v2244, %v2244
    %v2248 = vsel %vm1967, %v2245, 0
    %v2251 = vsel %vm1995, %v2183, 0
    %2253 = vmatpush.bf16.msra.mxu0 0
    %2254 = vmatpush.bf16.msra.mxu0 0
    %2255 = vmatpush.bf16.msra.mxu0 0
    %2256 = vmatpush.bf16.msra.mxu0 0
    %2257 = vmatpush.bf16.msra.mxu0 0
    %2258 = vmatpush.bf16.msra.mxu0 0
    %2259 = vmatpush.bf16.msra.mxu0 0
    %2260 = vmatpush.bf16.msra.mxu0 %v2251
    %2261 = vmatmul.bf16.gmra.mxu0 %v2248
    %v2262 = vpop.f32.mrf.mxu0
    %v2263 = vadd.f32 0.0, %v2262
    %v2264 = vpop.f32.mrf.mxu0
    %2265 = vdwg.mxu0
    %v2267 = vsel %vm1967, %v2246, 0
    %v2270 = vsel %vm1995, %v2184, 0
    %2272 = vmatpush.bf16.msra.mxu0 0
    %2273 = vmatpush.bf16.msra.mxu0 0
    %2274 = vmatpush.bf16.msra.mxu0 0
    %2275 = vmatpush.bf16.msra.mxu0 0
    %2276 = vmatpush.bf16.msra.mxu0 0
    %2277 = vmatpush.bf16.msra.mxu0 0
    %2278 = vmatpush.bf16.msra.mxu0 0
    %2279 = vmatpush.bf16.msra.mxu0 %v2270
    %2280 = vmatmul.bf16.gmra.mxu0 %v2267
    %v2281 = vpop.f32.mrf.mxu0
    %v2282 = vadd.f32 0.0, %v2281
    %v2283 = vpop.f32.mrf.mxu0
    %2284 = vdwg.mxu0
    %v2285 = vpack.c.bf16 %v2263, %v2263
    %v2286 = vpack.c.bf16 %v2282, %v2282
    %2287 = vrot.lane.b32.xlu0 %v1811, 64
    %v2288 = vpop.permute.xlu0 %2287
    %2289 = vrot.lane.b32.xlu0 %v1816, 64
    %v2290 = vpop.permute.xlu0 %2289
    %v2291 = vrot.slane %v2288, 4
    %v2292 = vrot.slane %v2290, 4
    %2293 = vrot.lane.b32.xlu0 %v1814, 64
    %v2294 = vpop.permute.xlu0 %2293
    %2295 = vrot.lane.b32.xlu0 %v1819, 64
    %v2296 = vpop.permute.xlu0 %2295
    %v2297 = vrot.slane %v2294, 4
    %v2298 = vrot.slane %v2296, 4
    %v2300 = vunpack.c.l.b16 %v1813
    %v2301 = vpack.c.b16 %v2300, %v2300
    %2302 = vrot.lane.b32.xlu0 %v2301, 64
    %v2303 = vpop.permute.xlu0 %2302
    %v2305 = vsel %vm1928, %v2291, 0
    %v2308 = vsel %vm1928, %v2303, 0
    %2310 = vmatpush.bf16.xpose.msra.mxu0 0
    %2311 = vmatpush.bf16.xpose.msra.mxu0 0
    %2312 = vmatpush.bf16.xpose.msra.mxu0 0
    %2313 = vmatpush.bf16.xpose.msra.mxu0 0
    %2314 = vmatpush.bf16.xpose.msra.mxu0 0
    %2315 = vmatpush.bf16.xpose.msra.mxu0 0
    %2316 = vmatpush.bf16.xpose.msra.mxu0 0
    %2317 = vmatpush.bf16.xpose.msra.mxu0 %v2308
    %2318 = vmatmul.bf16.gmra.mxu0 %v2305
    %v2319 = vpop.f32.mrf.mxu0
    %v2320 = vadd.f32 %v1826, %v2319
    %v2321 = vpop.f32.mrf.mxu0
    %2322 = vdwg.mxu0
    %v2324 = vunpack.c.l.b16 %v1818
    %v2325 = vpack.c.b16 %v2324, %v2324
    %2326 = vrot.lane.b32.xlu0 %v2325, 64
    %v2327 = vpop.permute.xlu0 %2326
    %v2329 = vsel %vm1928, %v2292, 0
    %v2332 = vsel %vm1928, %v2327, 0
    %2334 = vmatpush.bf16.xpose.msra.mxu0 0
    %2335 = vmatpush.bf16.xpose.msra.mxu0 0
    %2336 = vmatpush.bf16.xpose.msra.mxu0 0
    %2337 = vmatpush.bf16.xpose.msra.mxu0 0
    %2338 = vmatpush.bf16.xpose.msra.mxu0 0
    %2339 = vmatpush.bf16.xpose.msra.mxu0 0
    %2340 = vmatpush.bf16.xpose.msra.mxu0 0
    %2341 = vmatpush.bf16.xpose.msra.mxu0 %v2332
    %2342 = vmatmul.bf16.gmra.mxu0 %v2329
    %v2343 = vpop.f32.mrf.mxu0
    %v2344 = vadd.f32 %v1826, %v2343
    %v2345 = vpop.f32.mrf.mxu0
    %2346 = vdwg.mxu0
    %v2347 = vsel %vm1967, %v2320, -inf
    %2348 = vmax.xlane.f32.xlu0 %v2347
    %v2349 = vpop.xlane.xlu0 %2348
    %v2350 = vsel %vm1967, %v2344, -inf
    %2351 = vmax.xlane.f32.xlu0 %v2350
    %v2352 = vpop.xlane.xlu0 %2351
    %v2353 = vsub.f32 %v2320, %v2349
    %v2354 = vsub.f32 %v2344, %v2352
    %v2355 = vmul.f32 %v2353, 1.442695
    %v2356 = vpow.pop %v2355
    %v2357 = vmul.f32 %v2354, 1.442695
    %v2358 = vpow.pop %v2357
    %v2359 = vsel %vm1967, %v2356, 0.0
    %2360 = vadd.xlane.f32.xlu0 %v2359
    %v2361 = vpop.xlane.xlu0 %2360
    %v2362 = vsel %vm1967, %v2358, 0.0
    %2363 = vadd.xlane.f32.xlu0 %v2362
    %v2364 = vpop.xlane.xlu0 %2363
    %v2365 = vrcp.pop %v2361
    %v2366 = vrcp.pop %v2364
    %v2367 = vmul.f32 %v2356, %v2365
    %v2368 = vmul.f32 %v2358, %v2366
    %v2369 = vpack.c.bf16 %v2367, %v2367
    %v2370 = vpack.c.bf16 %v2368, %v2368
    %v2372 = vsel %vm1967, %v2369, 0
    %v2375 = vsel %vm1995, %v2297, 0
    %2377 = vmatpush.bf16.msra.mxu0 0
    %2378 = vmatpush.bf16.msra.mxu0 0
    %2379 = vmatpush.bf16.msra.mxu0 0
    %2380 = vmatpush.bf16.msra.mxu0 0
    %2381 = vmatpush.bf16.msra.mxu0 0
    %2382 = vmatpush.bf16.msra.mxu0 0
    %2383 = vmatpush.bf16.msra.mxu0 0
    %2384 = vmatpush.bf16.msra.mxu0 %v2375
    %2385 = vmatmul.bf16.gmra.mxu0 %v2372
    %v2386 = vpop.f32.mrf.mxu0
    %v2387 = vadd.f32 0.0, %v2386
    %v2388 = vpop.f32.mrf.mxu0
    %2389 = vdwg.mxu0
    %v2391 = vsel %vm1967, %v2370, 0
    %v2394 = vsel %vm1995, %v2298, 0
    %2396 = vmatpush.bf16.msra.mxu0 0
    %2397 = vmatpush.bf16.msra.mxu0 0
    %2398 = vmatpush.bf16.msra.mxu0 0
    %2399 = vmatpush.bf16.msra.mxu0 0
    %2400 = vmatpush.bf16.msra.mxu0 0
    %2401 = vmatpush.bf16.msra.mxu0 0
    %2402 = vmatpush.bf16.msra.mxu0 0
    %2403 = vmatpush.bf16.msra.mxu0 %v2394
    %2404 = vmatmul.bf16.gmra.mxu0 %v2391
    %v2405 = vpop.f32.mrf.mxu0
    %v2406 = vadd.f32 0.0, %v2405
    %v2407 = vpop.f32.mrf.mxu0
    %2408 = vdwg.mxu0
    %v2409 = vpack.c.bf16 %v2387, %v2387
    %v2410 = vpack.c.bf16 %v2406, %v2406
    %v2413 = vunpack.c.l.b16 %v2409
    %v2414 = vunpack.c.l.b16 %v2410
    %v2415 = vpack.c.b16 %v2413, %v2413
    %v2416 = vpack.c.b16 %v2414, %v2414
    %2417 = vrot.lane.b32.xlu0 %v2415, 64
    %v2418 = vpop.permute.xlu0 %2417
    %2419 = vrot.lane.b32.xlu0 %v2416, 64
    %v2420 = vpop.permute.xlu0 %2419
    %v2423 = vsel %vm1928, %v2285, %v2418
    %v2427 = vsel %vm1928, %v2286, %v2420
    %2429 = vst [vmem:[#allocation2 + $0x4] sm:$0xf] %v2423
    %2430 = vst [vmem:[#allocation2 + $0x10] sm:$0xf] %v2427
    %v2431 = vrot.slane %v1813, 4
    %v2432 = vrot.slane %v1818, 4
    %v2434 = vsel %vm1928, %v1812, 0
    %v2437 = vsel %vm1928, %v2431, 0
    %2439 = vmatpush.bf16.xpose.msra.mxu0 0
    %2440 = vmatpush.bf16.xpose.msra.mxu0 0
    %2441 = vmatpush.bf16.xpose.msra.mxu0 0
    %2442 = vmatpush.bf16.xpose.msra.mxu0 0
    %2443 = vmatpush.bf16.xpose.msra.mxu0 0
    %2444 = vmatpush.bf16.xpose.msra.mxu0 0
    %2445 = vmatpush.bf16.xpose.msra.mxu0 0
    %2446 = vmatpush.bf16.xpose.msra.mxu0 %v2437
    %2447 = vmatmul.bf16.gmra.mxu0 %v2434
    %v2448 = vpop.f32.mrf.mxu0
    %v2449 = vadd.f32 %v1826, %v2448
    %v2450 = vpop.f32.mrf.mxu0
    %2451 = vdwg.mxu0
    %v2453 = vsel %vm1928, %v1817, 0
    %v2456 = vsel %vm1928, %v2432, 0
    %2458 = vmatpush.bf16.xpose.msra.mxu0 0
    %2459 = vmatpush.bf16.xpose.msra.mxu0 0
    %2460 = vmatpush.bf16.xpose.msra.mxu0 0
    %2461 = vmatpush.bf16.xpose.msra.mxu0 0
    %2462 = vmatpush.bf16.xpose.msra.mxu0 0
    %2463 = vmatpush.bf16.xpose.msra.mxu0 0
    %2464 = vmatpush.bf16.xpose.msra.mxu0 0
    %2465 = vmatpush.bf16.xpose.msra.mxu0 %v2456
    %2466 = vmatmul.bf16.gmra.mxu0 %v2453
    %v2467 = vpop.f32.mrf.mxu0
    %v2468 = vadd.f32 %v1826, %v2467
    %v2469 = vpop.f32.mrf.mxu0
    %2470 = vdwg.mxu0
    %v2471 = vsel %vm1967, %v2449, -inf
    %2472 = vmax.xlane.f32.xlu0 %v2471
    %v2473 = vpop.xlane.xlu0 %2472
    %v2474 = vsel %vm1967, %v2468, -inf
    %2475 = vmax.xlane.f32.xlu0 %v2474
    %v2476 = vpop.xlane.xlu0 %2475
    %v2477 = vsub.f32 %v2449, %v2473
    %v2478 = vsub.f32 %v2468, %v2476
    %v2479 = vmul.f32 %v2477, 1.442695
    %v2480 = vpow.pop %v2479
    %v2481 = vmul.f32 %v2478, 1.442695
    %v2482 = vpow.pop %v2481
    %v2483 = vsel %vm1967, %v2480, 0.0
    %2484 = vadd.xlane.f32.xlu0 %v2483
    %v2485 = vpop.xlane.xlu0 %2484
    %v2486 = vsel %vm1967, %v2482, 0.0
    %2487 = vadd.xlane.f32.xlu0 %v2486
    %v2488 = vpop.xlane.xlu0 %2487
    %v2489 = vrcp.pop %v2485
    %v2490 = vrcp.pop %v2488
    %v2491 = vmul.f32 %v2480, %v2489
    %v2492 = vmul.f32 %v2482, %v2490
    %v2493 = vpack.c.bf16 %v2491, %v2491
    %v2494 = vpack.c.bf16 %v2492, %v2492
    %v2496 = vsel %vm1967, %v2493, 0
    %v2499 = vsel %vm1995, %v1815, 0
    %2501 = vmatpush.bf16.msra.mxu0 0
    %2502 = vmatpush.bf16.msra.mxu0 0
    %2503 = vmatpush.bf16.msra.mxu0 0
    %2504 = vmatpush.bf16.msra.mxu0 0
    %2505 = vmatpush.bf16.msra.mxu0 0
    %2506 = vmatpush.bf16.msra.mxu0 0
    %2507 = vmatpush.bf16.msra.mxu0 0
    %2508 = vmatpush.bf16.msra.mxu0 %v2499
    %2509 = vmatmul.bf16.gmra.mxu0 %v2496
    %v2510 = vpop.f32.mrf.mxu0
    %v2511 = vadd.f32 0.0, %v2510
    %v2512 = vpop.f32.mrf.mxu0
    %2513 = vdwg.mxu0
    %v2515 = vsel %vm1967, %v2494, 0
    %v2518 = vsel %vm1995, %v1820, 0
    %2520 = vmatpush.bf16.msra.mxu0 0
    %2521 = vmatpush.bf16.msra.mxu0 0
    %2522 = vmatpush.bf16.msra.mxu0 0
    %2523 = vmatpush.bf16.msra.mxu0 0
    %2524 = vmatpush.bf16.msra.mxu0 0
    %2525 = vmatpush.bf16.msra.mxu0 0
    %2526 = vmatpush.bf16.msra.mxu0 0
    %2527 = vmatpush.bf16.msra.mxu0 %v2518
    %2528 = vmatmul.bf16.gmra.mxu0 %v2515
    %v2529 = vpop.f32.mrf.mxu0
    %v2530 = vadd.f32 0.0, %v2529
    %v2531 = vpop.f32.mrf.mxu0
    %2532 = vdwg.mxu0
    %v2533 = vpack.c.bf16 %v2511, %v2511
    %v2534 = vpack.c.bf16 %v2530, %v2530
    %2535 = vrot.lane.b32.xlu0 %v1813, 64
    %v2536 = vpop.permute.xlu0 %2535
    %2537 = vrot.lane.b32.xlu0 %v1818, 64
    %v2538 = vpop.permute.xlu0 %2537
    %v2539 = vrot.slane %v2536, 4
    %v2540 = vrot.slane %v2538, 4
    %v2541 = vunpack.c.l.b16 %v1812
    %v2542 = vpack.c.b16 %v2541, %v2541
    %2543 = vrot.lane.b32.xlu0 %v2542, 64
    %v2544 = vpop.permute.xlu0 %2543
    %v2546 = vsel %vm1928, %v2544, 0
    %v2549 = vsel %vm1928, %v2539, 0
    %2551 = vmatpush.bf16.xpose.msra.mxu0 0
    %2552 = vmatpush.bf16.xpose.msra.mxu0 0
    %2553 = vmatpush.bf16.xpose.msra.mxu0 0
    %2554 = vmatpush.bf16.xpose.msra.mxu0 0
    %2555 = vmatpush.bf16.xpose.msra.mxu0 0
    %2556 = vmatpush.bf16.xpose.msra.mxu0 0
    %2557 = vmatpush.bf16.xpose.msra.mxu0 0
    %2558 = vmatpush.bf16.xpose.msra.mxu0 %v2549
    %2559 = vmatmul.bf16.gmra.mxu0 %v2546
    %v2560 = vpop.f32.mrf.mxu0
    %v2561 = vadd.f32 %v1826, %v2560
    %v2562 = vpop.f32.mrf.mxu0
    %2563 = vdwg.mxu0
    %v2564 = vunpack.c.l.b16 %v1817
    %v2565 = vpack.c.b16 %v2564, %v2564
    %2566 = vrot.lane.b32.xlu0 %v2565, 64
    %v2567 = vpop.permute.xlu0 %2566
    %v2569 = vsel %vm1928, %v2567, 0
    %v2572 = vsel %vm1928, %v2540, 0
    %2574 = vmatpush.bf16.xpose.msra.mxu0 0
    %2575 = vmatpush.bf16.xpose.msra.mxu0 0
    %2576 = vmatpush.bf16.xpose.msra.mxu0 0
    %2577 = vmatpush.bf16.xpose.msra.mxu0 0
    %2578 = vmatpush.bf16.xpose.msra.mxu0 0
    %2579 = vmatpush.bf16.xpose.msra.mxu0 0
    %2580 = vmatpush.bf16.xpose.msra.mxu0 0
    %2581 = vmatpush.bf16.xpose.msra.mxu0 %v2572
    %2582 = vmatmul.bf16.gmra.mxu0 %v2569
    %v2583 = vpop.f32.mrf.mxu0
    %v2584 = vadd.f32 %v1826, %v2583
    %v2585 = vpop.f32.mrf.mxu0
    %2586 = vdwg.mxu0
    %v2587 = vsel %vm1967, %v2561, -inf
    %2588 = vmax.xlane.f32.xlu0 %v2587
    %v2589 = vpop.xlane.xlu0 %2588
    %v2590 = vsel %vm1967, %v2584, -inf
    %2591 = vmax.xlane.f32.xlu0 %v2590
    %v2592 = vpop.xlane.xlu0 %2591
    %v2593 = vsub.f32 %v2561, %v2589
    %v2594 = vsub.f32 %v2584, %v2592
    %v2595 = vmul.f32 %v2593, 1.442695
    %v2596 = vpow.pop %v2595
    %v2597 = vmul.f32 %v2594, 1.442695
    %v2598 = vpow.pop %v2597
    %v2599 = vsel %vm1967, %v2596, 0.0
    %2600 = vadd.xlane.f32.xlu0 %v2599
    %v2601 = vpop.xlane.xlu0 %2600
    %v2602 = vsel %vm1967, %v2598, 0.0
    %2603 = vadd.xlane.f32.xlu0 %v2602
    %v2604 = vpop.xlane.xlu0 %2603
    %v2605 = vrcp.pop %v2601
    %v2606 = vrcp.pop %v2604
    %v2607 = vmul.f32 %v2596, %v2605
    %v2608 = vmul.f32 %v2598, %v2606
    %v2609 = vpack.c.bf16 %v2607, %v2607
    %v2610 = vpack.c.bf16 %v2608, %v2608
    %v2612 = vunpack.c.l.b16 %v1815
    %v2613 = vpack.c.b16 %v2612, %v2612
    %2614 = vrot.lane.b32.xlu0 %v2613, 64
    %v2615 = vpop.permute.xlu0 %2614
    %v2617 = vsel %vm1967, %v2609, 0
    %v2620 = vsel %vm1995, %v2615, 0
    %2622 = vmatpush.bf16.msra.mxu0 0
    %2623 = vmatpush.bf16.msra.mxu0 0
    %2624 = vmatpush.bf16.msra.mxu0 0
    %2625 = vmatpush.bf16.msra.mxu0 0
    %2626 = vmatpush.bf16.msra.mxu0 0
    %2627 = vmatpush.bf16.msra.mxu0 0
    %2628 = vmatpush.bf16.msra.mxu0 0
    %2629 = vmatpush.bf16.msra.mxu0 %v2620
    %2630 = vmatmul.bf16.gmra.mxu0 %v2617
    %v2631 = vpop.f32.mrf.mxu0
    %v2632 = vadd.f32 0.0, %v2631
    %v2633 = vpop.f32.mrf.mxu0
    %2634 = vdwg.mxu0
    %v2636 = vunpack.c.l.b16 %v1820
    %v2637 = vpack.c.b16 %v2636, %v2636
    %2638 = vrot.lane.b32.xlu0 %v2637, 64
    %v2639 = vpop.permute.xlu0 %2638
    %v2641 = vsel %vm1967, %v2610, 0
    %v2644 = vsel %vm1995, %v2639, 0
    %2646 = vmatpush.bf16.msra.mxu0 0
    %2647 = vmatpush.bf16.msra.mxu0 0
    %2648 = vmatpush.bf16.msra.mxu0 0
    %2649 = vmatpush.bf16.msra.mxu0 0
    %2650 = vmatpush.bf16.msra.mxu0 0
    %2651 = vmatpush.bf16.msra.mxu0 0
    %2652 = vmatpush.bf16.msra.mxu0 0
    %2653 = vmatpush.bf16.msra.mxu0 %v2644
    %2654 = vmatmul.bf16.gmra.mxu0 %v2641
    %v2655 = vpop.f32.mrf.mxu0
    %v2656 = vadd.f32 0.0, %v2655
    %v2657 = vpop.f32.mrf.mxu0
    %2658 = vdwg.mxu0
    %v2659 = vpack.c.bf16 %v2632, %v2632
    %v2660 = vpack.c.bf16 %v2656, %v2656
    %v2663 = vunpack.c.l.b16 %v2659
    %v2664 = vunpack.c.l.b16 %v2660
    %v2665 = vpack.c.b16 %v2663, %v2663
    %v2666 = vpack.c.b16 %v2664, %v2664
    %2667 = vrot.lane.b32.xlu0 %v2665, 64
    %v2668 = vpop.permute.xlu0 %2667
    %2669 = vrot.lane.b32.xlu0 %v2666, 64
    %v2670 = vpop.permute.xlu0 %2669
    %v2673 = vsel %vm1928, %v2533, %v2668
    %v2677 = vsel %vm1928, %v2534, %v2670
    %2679 = vst [vmem:[#allocation2 + $0x8] sm:$0xf] %v2673
    %2680 = vst [vmem:[#allocation2 + $0x14] sm:$0xf] %v2677
    %v2681 = vld [vmem:[#allocation2] sm:$0xff]
    %v2682 = vld [vmem:[#allocation2 + $0x8] sm:$0xf]
    %v2683 = vld [vmem:[#allocation2 + $0xc] sm:$0xff]
    %v2684 = vld [vmem:[#allocation2 + $0x14] sm:$0xf]
    %v2686 = vperm.slane %v1923, 0
    %v2687 = vperm.slane %v1923, 1
    %v2688 = vperm.slane %v1923, 2
    %v2696 = vunpack.c.l.b16 %v2681
    %v2697 = vunpack.c.h.b16 %v2681
    %v2698 = vunpack.c.l.b16 %v2682
    %v2699 = vunpack.c.l.b16 %v2683
    %v2700 = vunpack.c.h.b16 %v2683
    %v2701 = vunpack.c.l.b16 %v2684
    %v2702 = vpack.c.b16 %v2699, %v2696
    %v2703 = vpack.c.b16 %v2700, %v2697
    %v2704 = vpack.c.b16 %v2701, %v2698
    %v2804 = vunpack.c.l.b16 %v1827
    %v2805 = vunpack.c.h.b16 %v1827
    %v2806 = vunpack.c.l.b16 %v1828
    %v2807 = vunpack.c.l.b16 %v1829
    %v2808 = vunpack.c.h.b16 %v1829
    %v2809 = vunpack.c.l.b16 %v1830
    %v2810 = vunpack.c.l.b16 %v1831
    %v2811 = vunpack.c.h.b16 %v1831
    %v2812 = vunpack.c.l.b16 %v1832
    %v2813 = vunpack.c.l.b16 %v1833
    %v2814 = vunpack.c.h.b16 %v1833
    %v2815 = vunpack.c.l.b16 %v1834
    %v2816 = vunpack.c.l.b16 %v1835
    %v2817 = vunpack.c.h.b16 %v1835
    %v2818 = vunpack.c.l.b16 %v1836
    %v2819 = vunpack.c.l.b16 %v1837
    %v2820 = vunpack.c.h.b16 %v1837
    %v2821 = vunpack.c.l.b16 %v1838
    %v2822 = vunpack.c.l.b16 %v1839
    %v2823 = vunpack.c.h.b16 %v1839
    %v2824 = vunpack.c.l.b16 %v1840
    %v2825 = vunpack.c.l.b16 %v1841
    %v2826 = vunpack.c.h.b16 %v1841
    %v2827 = vunpack.c.l.b16 %v1842
    %v2828 = vunpack.c.l.b16 %v1843
    %v2829 = vunpack.c.h.b16 %v1843
    %v2830 = vunpack.c.l.b16 %v1844
    %v2831 = vunpack.c.l.b16 %v1845
    %v2832 = vunpack.c.h.b16 %v1845
    %v2833 = vunpack.c.l.b16 %v1846
    %v2834 = vunpack.c.l.b16 %v1847
    %v2835 = vunpack.c.h.b16 %v1847
    %v2836 = vunpack.c.l.b16 %v1848
    %v2837 = vunpack.c.l.b16 %v1849
    %v2838 = vunpack.c.h.b16 %v1849
    %v2839 = vunpack.c.l.b16 %v1850
    %v2840 = vunpack.c.l.b16 %v1851
    %v2841 = vunpack.c.h.b16 %v1851
    %v2842 = vunpack.c.l.b16 %v1852
    %v2843 = vunpack.c.l.b16 %v1853
    %v2844 = vunpack.c.h.b16 %v1853
    %v2845 = vunpack.c.l.b16 %v1854
    %v2846 = vunpack.c.l.b16 %v1855
    %v2847 = vunpack.c.h.b16 %v1855
    %v2848 = vunpack.c.l.b16 %v1856
    %v2849 = vunpack.c.l.b16 %v1857
    %v2850 = vunpack.c.h.b16 %v1857
    %v2851 = vunpack.c.l.b16 %v1858
    %v2852 = vunpack.c.l.b16 %v1859
    %v2853 = vunpack.c.h.b16 %v1859
    %v2854 = vunpack.c.l.b16 %v1860
    %v2855 = vunpack.c.l.b16 %v1861
    %v2856 = vunpack.c.h.b16 %v1861
    %v2857 = vunpack.c.l.b16 %v1862
    %v2858 = vunpack.c.l.b16 %v1863
    %v2859 = vunpack.c.h.b16 %v1863
    %v2860 = vunpack.c.l.b16 %v1864
    %v2861 = vunpack.c.l.b16 %v1865
    %v2862 = vunpack.c.h.b16 %v1865
    %v2863 = vunpack.c.l.b16 %v1866
    %v2864 = vunpack.c.l.b16 %v1867
    %v2865 = vunpack.c.h.b16 %v1867
    %v2866 = vunpack.c.l.b16 %v1868
    %v2867 = vunpack.c.l.b16 %v1869
    %v2868 = vunpack.c.h.b16 %v1869
    %v2869 = vunpack.c.l.b16 %v1870
    %v2870 = vunpack.c.l.b16 %v1871
    %v2871 = vunpack.c.h.b16 %v1871
    %v2872 = vunpack.c.l.b16 %v1872
    %v2873 = vunpack.c.l.b16 %v1873
    %v2874 = vunpack.c.h.b16 %v1873
    %v2875 = vunpack.c.l.b16 %v1874
    %v2876 = vunpack.c.l.b16 %v1875
    %v2877 = vunpack.c.h.b16 %v1875
    %v2878 = vunpack.c.l.b16 %v1876
    %v2879 = vunpack.c.l.b16 %v1877
    %v2880 = vunpack.c.h.b16 %v1877
    %v2881 = vunpack.c.l.b16 %v1878
    %v2882 = vunpack.c.l.b16 %v1879
    %v2883 = vunpack.c.h.b16 %v1879
    %v2884 = vunpack.c.l.b16 %v1880
    %v2885 = vunpack.c.l.b16 %v1881
    %v2886 = vunpack.c.h.b16 %v1881
    %v2887 = vunpack.c.l.b16 %v1882
    %v2888 = vunpack.c.l.b16 %v1883
    %v2889 = vunpack.c.h.b16 %v1883
    %v2890 = vunpack.c.l.b16 %v1884
    %v2891 = vunpack.c.l.b16 %v1885
    %v2892 = vunpack.c.h.b16 %v1885
    %v2893 = vunpack.c.l.b16 %v1886
    %v2894 = vunpack.c.l.b16 %v1887
    %v2895 = vunpack.c.h.b16 %v1887
    %v2896 = vunpack.c.l.b16 %v1888
    %v2897 = vunpack.c.l.b16 %v1889
    %v2898 = vunpack.c.h.b16 %v1889
    %v2899 = vunpack.c.l.b16 %v1890
    %v2900 = vunpack.c.l.b16 %v1891
    %v2901 = vunpack.c.h.b16 %v1891
    %v2902 = vunpack.c.l.b16 %v1892
    %v2903 = vunpack.c.l.b16 %v1893
    %v2904 = vunpack.c.h.b16 %v1893
    %v2905 = vunpack.c.l.b16 %v1894
    %v2906 = vunpack.c.l.b16 %v1895
    %v2907 = vunpack.c.h.b16 %v1895
    %v2908 = vunpack.c.l.b16 %v1896
    %v2909 = vunpack.c.l.b16 %v1897
    %v2910 = vunpack.c.h.b16 %v1897
    %v2911 = vunpack.c.l.b16 %v1898
    %v2912 = vunpack.c.l.b16 %v1899
    %v2913 = vunpack.c.h.b16 %v1899
    %v2914 = vunpack.c.l.b16 %v1900
    %v2915 = vunpack.c.l.b16 %v1901
    %v2916 = vunpack.c.h.b16 %v1901
    %v2917 = vunpack.c.l.b16 %v1902
    %v2918 = vunpack.c.l.b16 %v1903
    %v2919 = vunpack.c.h.b16 %v1903
    %v2920 = vunpack.c.l.b16 %v1904
    %v2921 = vunpack.c.l.b16 %v1905
    %v2922 = vunpack.c.h.b16 %v1905
    %v2923 = vunpack.c.l.b16 %v1906
    %v2924 = vunpack.c.l.b16 %v1907
    %v2925 = vunpack.c.h.b16 %v1907
    %v2926 = vunpack.c.l.b16 %v1908
    %v2927 = vunpack.c.l.b16 %v1909
    %v2928 = vunpack.c.h.b16 %v1909
    %v2929 = vunpack.c.l.b16 %v1910
    %v2930 = vunpack.c.l.b16 %v1911
    %v2931 = vunpack.c.h.b16 %v1911
    %v2932 = vunpack.c.l.b16 %v1912
    %v2933 = vunpack.c.l.b16 %v1913
    %v2934 = vunpack.c.h.b16 %v1913
    %v2935 = vunpack.c.l.b16 %v1914
    %v2936 = vunpack.c.l.b16 %v1915
    %v2937 = vunpack.c.h.b16 %v1915
    %v2938 = vunpack.c.l.b16 %v1916
    %v2939 = vunpack.c.l.b16 %v1917
    %v2940 = vunpack.c.h.b16 %v1917
    %v2941 = vunpack.c.l.b16 %v1918
    %v2942 = vunpack.c.l.b16 %v1919
    %v2943 = vunpack.c.h.b16 %v1919
    %v2944 = vunpack.c.l.b16 %v1920
    %v2945 = vunpack.c.l.b16 %v1921
    %v2946 = vunpack.c.h.b16 %v1921
    %v2947 = vunpack.c.l.b16 %v1922
    %v2948 = vpack.c.b16 %v2807, %v2804
    %v2949 = vpack.c.b16 %v2808, %v2805
    %v2950 = vpack.c.b16 %v2809, %v2806
    %v2951 = vpack.c.b16 %v2813, %v2810
    %v2952 = vpack.c.b16 %v2814, %v2811
    %v2953 = vpack.c.b16 %v2815, %v2812
    %v2954 = vpack.c.b16 %v2819, %v2816
    %v2955 = vpack.c.b16 %v2820, %v2817
    %v2956 = vpack.c.b16 %v2821, %v2818
    %v2957 = vpack.c.b16 %v2825, %v2822
    %v2958 = vpack.c.b16 %v2826, %v2823
    %v2959 = vpack.c.b16 %v2827, %v2824
    %v2960 = vpack.c.b16 %v2831, %v2828
    %v2961 = vpack.c.b16 %v2832, %v2829
    %v2962 = vpack.c.b16 %v2833, %v2830
    %v2963 = vpack.c.b16 %v2837, %v2834
    %v2964 = vpack.c.b16 %v2838, %v2835
    %v2965 = vpack.c.b16 %v2839, %v2836
    %v2966 = vpack.c.b16 %v2843, %v2840
    %v2967 = vpack.c.b16 %v2844, %v2841
    %v2968 = vpack.c.b16 %v2845, %v2842
    %v2969 = vpack.c.b16 %v2849, %v2846
    %v2970 = vpack.c.b16 %v2850, %v2847
    %v2971 = vpack.c.b16 %v2851, %v2848
    %v2972 = vpack.c.b16 %v2855, %v2852
    %v2973 = vpack.c.b16 %v2856, %v2853
    %v2974 = vpack.c.b16 %v2857, %v2854
    %v2975 = vpack.c.b16 %v2861, %v2858
    %v2976 = vpack.c.b16 %v2862, %v2859
    %v2977 = vpack.c.b16 %v2863, %v2860
    %v2978 = vpack.c.b16 %v2867, %v2864
    %v2979 = vpack.c.b16 %v2868, %v2865
    %v2980 = vpack.c.b16 %v2869, %v2866
    %v2981 = vpack.c.b16 %v2873, %v2870
    %v2982 = vpack.c.b16 %v2874, %v2871
    %v2983 = vpack.c.b16 %v2875, %v2872
    %v2984 = vpack.c.b16 %v2879, %v2876
    %v2985 = vpack.c.b16 %v2880, %v2877
    %v2986 = vpack.c.b16 %v2881, %v2878
    %v2987 = vpack.c.b16 %v2885, %v2882
    %v2988 = vpack.c.b16 %v2886, %v2883
    %v2989 = vpack.c.b16 %v2887, %v2884
    %v2990 = vpack.c.b16 %v2891, %v2888
    %v2991 = vpack.c.b16 %v2892, %v2889
    %v2992 = vpack.c.b16 %v2893, %v2890
    %v2993 = vpack.c.b16 %v2897, %v2894
    %v2994 = vpack.c.b16 %v2898, %v2895
    %v2995 = vpack.c.b16 %v2899, %v2896
    %v2996 = vpack.c.b16 %v2903, %v2900
    %v2997 = vpack.c.b16 %v2904, %v2901
    %v2998 = vpack.c.b16 %v2905, %v2902
    %v2999 = vpack.c.b16 %v2909, %v2906
    %v3000 = vpack.c.b16 %v2910, %v2907
    %v3001 = vpack.c.b16 %v2911, %v2908
    %v3002 = vpack.c.b16 %v2915, %v2912
    %v3003 = vpack.c.b16 %v2916, %v2913
    %v3004 = vpack.c.b16 %v2917, %v2914
    %v3005 = vpack.c.b16 %v2921, %v2918
    %v3006 = vpack.c.b16 %v2922, %v2919
    %v3007 = vpack.c.b16 %v2923, %v2920
    %v3008 = vpack.c.b16 %v2927, %v2924
    %v3009 = vpack.c.b16 %v2928, %v2925
    %v3010 = vpack.c.b16 %v2929, %v2926
    %v3011 = vpack.c.b16 %v2933, %v2930
    %v3012 = vpack.c.b16 %v2934, %v2931
    %v3013 = vpack.c.b16 %v2935, %v2932
    %v3014 = vpack.c.b16 %v2939, %v2936
    %v3015 = vpack.c.b16 %v2940, %v2937
    %v3016 = vpack.c.b16 %v2941, %v2938
    %v3017 = vpack.c.b16 %v2945, %v2942
    %v3018 = vpack.c.b16 %v2946, %v2943
    %v3019 = vpack.c.b16 %v2947, %v2944
    %3092 = vmatpush.bf16.msra.mxu0 %v2969
    %3093 = vmatpush.bf16.msra.mxu0 %v2966
    %3094 = vmatpush.bf16.msra.mxu0 %v2963
    %3095 = vmatpush.bf16.msra.mxu0 %v2960
    %3096 = vmatpush.bf16.msra.mxu0 %v2957
    %3097 = vmatpush.bf16.msra.mxu0 %v2954
    %3098 = vmatpush.bf16.msra.mxu0 %v2951
    %3099 = vmatpush.bf16.msra.mxu0 %v2948
    %3100 = vmatmul.bf16.gmra.mxu0 %v2702
    %v3101 = vpop.f32.mrf.mxu0
    %v3102 = vadd.f32 %v2686, %v3101
    %v3103 = vpop.f32.mrf.mxu0
    %v3104 = vadd.f32 %v2686, %v3103
    %3105 = vdwg.mxu0
    %3106 = vmatpush.bf16.msra.mxu0 %v2993
    %3107 = vmatpush.bf16.msra.mxu0 %v2990
    %3108 = vmatpush.bf16.msra.mxu0 %v2987
    %3109 = vmatpush.bf16.msra.mxu0 %v2984
    %3110 = vmatpush.bf16.msra.mxu0 %v2981
    %3111 = vmatpush.bf16.msra.mxu0 %v2978
    %3112 = vmatpush.bf16.msra.mxu0 %v2975
    %3113 = vmatpush.bf16.msra.mxu0 %v2972
    %3114 = vmatmul.bf16.gmra.mxu0 %v2703
    %v3115 = vpop.f32.mrf.mxu0
    %v3116 = vadd.f32 %v3102, %v3115
    %v3117 = vpop.f32.mrf.mxu0
    %v3118 = vadd.f32 %v3104, %v3117
    %3119 = vdwg.mxu0
    %3120 = vmatpush.bf16.msra.mxu0 %v3017
    %3121 = vmatpush.bf16.msra.mxu0 %v3014
    %3122 = vmatpush.bf16.msra.mxu0 %v3011
    %3123 = vmatpush.bf16.msra.mxu0 %v3008
    %3124 = vmatpush.bf16.msra.mxu0 %v3005
    %3125 = vmatpush.bf16.msra.mxu0 %v3002
    %3126 = vmatpush.bf16.msra.mxu0 %v2999
    %3127 = vmatpush.bf16.msra.mxu0 %v2996
    %3128 = vmatmul.bf16.gmra.mxu0 %v2704
    %v3129 = vpop.f32.mrf.mxu0
    %v3130 = vadd.f32 %v3116, %v3129
    %v3131 = vpop.f32.mrf.mxu0
    %v3132 = vadd.f32 %v3118, %v3131
    %3133 = vdwg.mxu0
    %3134 = vmatpush.bf16.msra.mxu0 %v2970
    %3135 = vmatpush.bf16.msra.mxu0 %v2967
    %3136 = vmatpush.bf16.msra.mxu0 %v2964
    %3137 = vmatpush.bf16.msra.mxu0 %v2961
    %3138 = vmatpush.bf16.msra.mxu0 %v2958
    %3139 = vmatpush.bf16.msra.mxu0 %v2955
    %3140 = vmatpush.bf16.msra.mxu0 %v2952
    %3141 = vmatpush.bf16.msra.mxu0 %v2949
    %3142 = vmatmul.bf16.gmra.mxu0 %v2702
    %v3143 = vpop.f32.mrf.mxu0
    %v3144 = vadd.f32 %v2687, %v3143
    %v3145 = vpop.f32.mrf.mxu0
    %v3146 = vadd.f32 %v2687, %v3145
    %3147 = vdwg.mxu0
    %3148 = vmatpush.bf16.msra.mxu0 %v2994
    %3149 = vmatpush.bf16.msra.mxu0 %v2991
    %3150 = vmatpush.bf16.msra.mxu0 %v2988
    %3151 = vmatpush.bf16.msra.mxu0 %v2985
    %3152 = vmatpush.bf16.msra.mxu0 %v2982
    %3153 = vmatpush.bf16.msra.mxu0 %v2979
    %3154 = vmatpush.bf16.msra.mxu0 %v2976
    %3155 = vmatpush.bf16.msra.mxu0 %v2973
    %3156 = vmatmul.bf16.gmra.mxu0 %v2703
    %v3157 = vpop.f32.mrf.mxu0
    %v3158 = vadd.f32 %v3144, %v3157
    %v3159 = vpop.f32.mrf.mxu0
    %v3160 = vadd.f32 %v3146, %v3159
    %3161 = vdwg.mxu0
    %3162 = vmatpush.bf16.msra.mxu0 %v3018
    %3163 = vmatpush.bf16.msra.mxu0 %v3015
    %3164 = vmatpush.bf16.msra.mxu0 %v3012
    %3165 = vmatpush.bf16.msra.mxu0 %v3009
    %3166 = vmatpush.bf16.msra.mxu0 %v3006
    %3167 = vmatpush.bf16.msra.mxu0 %v3003
    %3168 = vmatpush.bf16.msra.mxu0 %v3000
    %3169 = vmatpush.bf16.msra.mxu0 %v2997
    %3170 = vmatmul.bf16.gmra.mxu0 %v2704
    %v3171 = vpop.f32.mrf.mxu0
    %v3172 = vadd.f32 %v3158, %v3171
    %v3173 = vpop.f32.mrf.mxu0
    %v3174 = vadd.f32 %v3160, %v3173
    %3175 = vdwg.mxu0
    %3176 = vmatpush.bf16.msra.mxu0 %v2971
    %3177 = vmatpush.bf16.msra.mxu0 %v2968
    %3178 = vmatpush.bf16.msra.mxu0 %v2965
    %3179 = vmatpush.bf16.msra.mxu0 %v2962
    %3180 = vmatpush.bf16.msra.mxu0 %v2959
    %3181 = vmatpush.bf16.msra.mxu0 %v2956
    %3182 = vmatpush.bf16.msra.mxu0 %v2953
    %3183 = vmatpush.bf16.msra.mxu0 %v2950
    %3184 = vmatmul.bf16.gmra.mxu0 %v2702
    %v3185 = vpop.f32.mrf.mxu0
    %v3186 = vadd.f32 %v2688, %v3185
    %v3187 = vpop.f32.mrf.mxu0
    %v3188 = vadd.f32 %v2688, %v3187
    %3189 = vdwg.mxu0
    %3190 = vmatpush.bf16.msra.mxu0 %v2995
    %3191 = vmatpush.bf16.msra.mxu0 %v2992
    %3192 = vmatpush.bf16.msra.mxu0 %v2989
    %3193 = vmatpush.bf16.msra.mxu0 %v2986
    %3194 = vmatpush.bf16.msra.mxu0 %v2983
    %3195 = vmatpush.bf16.msra.mxu0 %v2980
    %3196 = vmatpush.bf16.msra.mxu0 %v2977
    %3197 = vmatpush.bf16.msra.mxu0 %v2974
    %3198 = vmatmul.bf16.gmra.mxu0 %v2703
    %v3199 = vpop.f32.mrf.mxu0
    %v3200 = vadd.f32 %v3186, %v3199
    %v3201 = vpop.f32.mrf.mxu0
    %v3202 = vadd.f32 %v3188, %v3201
    %3203 = vdwg.mxu0
    %3204 = vmatpush.bf16.msra.mxu0 %v3019
    %3205 = vmatpush.bf16.msra.mxu0 %v3016
    %3206 = vmatpush.bf16.msra.mxu0 %v3013
    %3207 = vmatpush.bf16.msra.mxu0 %v3010
    %3208 = vmatpush.bf16.msra.mxu0 %v3007
    %3209 = vmatpush.bf16.msra.mxu0 %v3004
    %3210 = vmatpush.bf16.msra.mxu0 %v3001
    %3211 = vmatpush.bf16.msra.mxu0 %v2998
    %3212 = vmatmul.bf16.gmra.mxu0 %v2704
    %v3213 = vpop.f32.mrf.mxu0
    %v3214 = vadd.f32 %v3200, %v3213
    %v3215 = vpop.f32.mrf.mxu0
    %v3216 = vadd.f32 %v3202, %v3215
    %3217 = vdwg.mxu0
    %3218 = vst [vmem:[#allocation11] sm:$0xff] %v3130
    %3219 = vst [vmem:[#allocation11 + $0x8] sm:$0xff] %v3172
    %3220 = vst [vmem:[#allocation11 + $0x10] sm:$0xff] %v3214
    %3221 = vst [vmem:[#allocation11 + $0x18] sm:$0xff] %v3132
    %3222 = vst [vmem:[#allocation11 + $0x20] sm:$0xff] %v3174
    %3223 = vst [vmem:[#allocation11 + $0x28] sm:$0xff] %v3216
    // Predicated region
    $region34: #{tpu_custom_call.1} parent=1 // pred_check
      _
    $region35: #{tpu_custom_call.1} parent=1 // pred_check_branch
      %3225 = sbr.rel (0) target = $region37
    $region36: #{tpu_custom_call.1} parent=1 // pred_region
      %3227 = vsyncadd [#allocation5], 0
      %s3228 = sshll.u32 [#allocation11], 4
      %s3229 = int_to_ptr.vmem [resolvable:$true] %s3228
      %s3230 = sshll.u32 %s4, 4
      %s3231 = int_to_ptr.hbm [resolvable:$true] %s3230
      %3236 = dma.vmem_to_hbm [thread:$0]  %s3229, 768, %s3231, [#allocation5], 384, 384, 24
    $region37: #{tpu_custom_call.1} parent=1 // pred_fallthru
      _
    // Predicated region
    $region38: #{tpu_custom_call.1} parent=1 // pred_check
      _
    $region39: #{tpu_custom_call.1} parent=1 // pred_check_branch
      %3238 = sbr.rel (0) target = $region41
    $region40: #{tpu_custom_call.1} parent=1 // pred_region
      %3240 = dma.done [#allocation5], 768
    $region41: #{tpu_custom_call.1} parent=1 // pred_fallthru
      _
    %3241 = vsyncpa [#allocation4], 1
    %3242 = vsyncpa [#allocation7], 1
    %3243 = vsyncpa [#allocation10], 1
    %3244 = vsyncpa [#allocation5], 1

</llo_original>
